<compile_context>
chip_gen: v7x
topology: tpu7x:2x2x1
jax: 0.10.0
libtpu: 0.0.40
codegen_flags: <defaults>
</compile_context>

<pallas_src>
import jax
import jax.numpy as jnp
from jax.experimental import pallas as pl
from jax.experimental.pallas import tpu as pltpu

# ----------------------------- model config ---------------------------------
BINS = 64            # quantization_bins
C = 32               # channels
KERNEL_SIZE = 2
DILATION_DEPTH = 4
BLOCKS = 1
DILATIONS = [2 ** i for i in range(DILATION_DEPTH)] * BLOCKS
RECEPTIVE_FIELD = sum((KERNEL_SIZE - 1) * d for d in DILATIONS)   # = 15
L = len(DILATIONS)

B = 2
T = 40
T_OUT = T - RECEPTIVE_FIELD                                       # = 25

# ---------------------- packed parameter buffer layout ----------------------
LANES = 128                        # lane-pad everything to full vreg width
ROW_W_IN = 0                       # (BINS, C)   embedding @ pre_conv (folded)
ROW_FG_W = ROW_W_IN + BINS         # (L, 2C, 2C) fused 2-tap dilated conv W
ROW_RES_W = ROW_FG_W + L * 2 * C   # (L, C, C)   conv_1x1
ROW_POST1_W = ROW_RES_W + L * C    # (C, C)
ROW_POST2_W = ROW_POST1_W + C      # (C, LANES)  BINS padded to 128 lanes
ROW_PRE_B = ROW_POST2_W + C        # bias rows (one per row)
ROW_FG_B = ROW_PRE_B + 1           # L rows
ROW_RES_B = ROW_FG_B + L           # L rows
ROW_POST1_B = ROW_RES_B + L
ROW_POST2_B = ROW_POST1_B + 1
N_PARAM_ROWS = ((ROW_POST2_B + 1 + 7) // 8) * 8                   # = 528


# ------------------------------ Pallas kernel --------------------------------
def _wavenet_kernel(ids_ref, p_ref, out_ref):
    bt = ids_ref.shape[0]                                          # B*T rows

    # one-hot built in-kernel (VPU compare vs lane iota), then the folded
    # (embedding @ pre_process_conv) weight -> (bt, C) activations.
    onehot = (ids_ref[...] ==
              jax.lax.broadcasted_iota(jnp.int32, (bt, BINS), 1)).astype(jnp.float32)
    x = (jnp.dot(onehot, p_ref[ROW_W_IN:ROW_W_IN + BINS, :C],
                 preferred_element_type=jnp.float32)
         + p_ref[ROW_PRE_B:ROW_PRE_B + 1, :C])                     # (bt, C)

    skip_acc = jnp.zeros((bt, C), jnp.float32)
    for l, d in enumerate(DILATIONS):
        # Earlier conv tap: shift the fixed end-aligned frame down by d.
        # Wrapped-in rows only ever land in the first RECEPTIVE_FIELD rows of
        # each batch frame, which are discarded by the wrapper.
        x_prev = pltpu.roll(x, shift=d, axis=0)                    # x_prev[t] = x[t-d]
        xx = jnp.concatenate([x_prev, x], axis=-1)                 # (bt, 2C)
        fg = (jnp.dot(xx,
                      p_ref[ROW_FG_W + 2 * C * l: ROW_FG_W + 2 * C * (l + 1), :2 * C],
                      preferred_element_type=jnp.float32)
              + p_ref[ROW_FG_B + l: ROW_FG_B + l + 1, :2 * C])     # (bt, 2C)
        z = jnp.tanh(fg[:, :C]) * jax.nn.sigmoid(fg[:, C:])        # gated unit
        skip = (jnp.dot(z,
                        p_ref[ROW_RES_W + C * l: ROW_RES_W + C * (l + 1), :C],
                        preferred_element_type=jnp.float32)
                + p_ref[ROW_RES_B + l: ROW_RES_B + l + 1, :C])     # (bt, C)
        x = x + skip                                               # residual
        skip_acc = skip_acc + skip

    # post-processing: relu -> 1x1 conv -> relu -> 1x1 conv (BINS padded to 128)
    h = jnp.maximum(skip_acc, 0.0)
    h = (jnp.dot(h, p_ref[ROW_POST1_W:ROW_POST1_W + C, :C],
                 preferred_element_type=jnp.float32)
         + p_ref[ROW_POST1_B:ROW_POST1_B + 1, :C])
    h = jnp.maximum(h, 0.0)
    out = (jnp.dot(h, p_ref[ROW_POST2_W:ROW_POST2_W + C, :],
                   preferred_element_type=jnp.float32)
           + p_ref[ROW_POST2_B:ROW_POST2_B + 1, :])                # (bt, 128)
    out_ref[...] = out                                             # unmasked store


# -------------------------- parameter packing / wrapper ----------------------
def _pack_params(p):
    """Fold emb@pre_conv, fuse conv taps, and pack everything into one buffer."""
    buf = jnp.zeros((N_PARAM_ROWS, LANES), jnp.float32)
    w_in = jnp.dot(p["emb"], p["pre_w"], precision=jax.lax.Precision.HIGHEST)
    fg_w = jnp.concatenate([p["fg_w0"], p["fg_w1"]], axis=1)       # (L, 2C, 2C)
    buf = buf.at[ROW_W_IN:ROW_W_IN + BINS, :C].set(w_in)
    buf = buf.at[ROW_FG_W:ROW_FG_W + L * 2 * C, :2 * C].set(fg_w.reshape(L * 2 * C, 2 * C))
    buf = buf.at[ROW_RES_W:ROW_RES_W + L * C, :C].set(p["res_w"].reshape(L * C, C))
    buf = buf.at[ROW_POST1_W:ROW_POST1_W + C, :C].set(p["post1_w"])
    buf = buf.at[ROW_POST2_W:ROW_POST2_W + C, :BINS].set(p["post2_w"])
    buf = buf.at[ROW_PRE_B, :C].set(p["pre_b"][0])
    buf = buf.at[ROW_FG_B:ROW_FG_B + L, :2 * C].set(p["fg_b"][:, 0, :])
    buf = buf.at[ROW_RES_B:ROW_RES_B + L, :C].set(p["res_b"][:, 0, :])
    buf = buf.at[ROW_POST1_B, :C].set(p["post1_b"][0])
    buf = buf.at[ROW_POST2_B, :BINS].set(p["post2_b"][0])
    return buf


@jax.jit
def wavenet_forward(quantized_x, params):
    """quantized_x: int32 (B, T) indices in [0, BINS).  Returns (B, BINS, T_OUT)."""
    batch, t_len = quantized_x.shape
    ids = quantized_x.reshape(batch * t_len, 1).astype(jnp.int32)
    packed = _pack_params(params)

    out = pl.pallas_call(
        _wavenet_kernel,
        out_shape=jax.ShapeDtypeStruct((batch * t_len, LANES), jnp.float32),
        in_specs=[pl.BlockSpec(memory_space=pltpu.MemorySpace.VMEM),
                  pl.BlockSpec(memory_space=pltpu.MemorySpace.VMEM)],
        out_specs=pl.BlockSpec(memory_space=pltpu.MemorySpace.VMEM),
    )(ids, packed)

    # trailing T_OUT samples per batch, first BINS lanes; back to PyTorch NCT.
    out = out.reshape(batch, t_len, LANES)[:, RECEPTIVE_FIELD:, :BINS]
    return jnp.transpose(out, (0, 2, 1))


# -------------------------- deterministic parameters -------------------------
def init_params(key):
    ks = jax.random.split(key, 12)
    s = 0.1
    # weights stored transposed (Cin, Cout) so y = x @ W + b in channels-last layout
    return {
        "emb":     s * jax.random.normal(ks[0], (BINS, C), jnp.float32),
        "pre_w":   s * jax.random.normal(ks[1], (C, C), jnp.float32),
        "pre_b":   s * jax.random.normal(ks[2], (1, C), jnp.float32),
        "fg_w0":   s * jax.random.normal(ks[3], (L, C, 2 * C), jnp.float32),  # conv_fg tap k=0
        "fg_w1":   s * jax.random.normal(ks[4], (L, C, 2 * C), jnp.float32),  # conv_fg tap k=1
        "fg_b":    s * jax.random.normal(ks[5], (L, 1, 2 * C), jnp.float32),
        "res_w":   s * jax.random.normal(ks[6], (L, C, C), jnp.float32),      # conv_1x1
        "res_b":   s * jax.random.normal(ks[7], (L, 1, C), jnp.float32),
        "post1_w": s * jax.random.normal(ks[8], (C, C), jnp.float32),
        "post1_b": s * jax.random.normal(ks[9], (1, C), jnp.float32),
        "post2_w": s * jax.random.normal(ks[10], (C, BINS), jnp.float32),
        "post2_b": s * jax.random.normal(ks[11], (1, BINS), jnp.float32),
    }


# ------------------------------ pure-JAX reference ---------------------------
def reference_forward(quantized_x, p):
    x = p["emb"][quantized_x]                                       # (B, T, C)
    x = x @ p["pre_w"] + p["pre_b"]
    skips = []
    for l, d in enumerate(DILATIONS):
        out_len = x.shape[1] - d
        fg = x[:, :out_len] @ p["fg_w0"][l] + x[:, d:] @ p["fg_w1"][l] + p["fg_b"][l]
        z = jnp.tanh(fg[..., :C]) * jax.nn.sigmoid(fg[..., C:])
        skip = z @ p["res_w"][l] + p["res_b"][l]
        x = x[:, d:] + skip
        skips.append(skip)
    t_out = skips[-1].shape[1]
    h = sum(sk[:, -t_out:] for sk in skips)
    h = jnp.maximum(h, 0.0)
    h = jnp.maximum(h @ p["post1_w"] + p["post1_b"], 0.0)
    out = h @ p["post2_w"] + p["post2_b"]
    return jnp.transpose(out, (0, 2, 1))


# ----------------------------------- main ------------------------------------
if __name__ == "__main__":
    key = jax.random.PRNGKey(0)
    k_in, k_p = jax.random.split(key)
    quantized_x = jax.random.randint(k_in, (B, T), 0, BINS, dtype=jnp.int32)
    params = init_params(k_p)

    out = wavenet_forward(quantized_x, params)
    out = jax.block_until_ready(out)

    ref = reference_forward(quantized_x, params)
    assert out.shape == (B, BINS, T_OUT), out.shape
    assert jnp.allclose(out, ref, atol=1e-4, rtol=1e-4), \
        float(jnp.max(jnp.abs(out - ref)))

    print("KERNEL_OK")
</pallas_src>

<mosaic_0001>
module attributes {stable_mosaic.version = 11 : i64} {
  func.func @_wavenet_kernel(%arg0: memref<80x1xi32, #tpu.memory_space<vmem>>, %arg1: memref<528x128xf32, #tpu.memory_space<vmem>>, %arg2: memref<80x128xf32, #tpu.memory_space<vmem>>) attributes {dimension_semantics = [], scalar_prefetch = 0 : i64, scratch_operands = 0 : i64, tpu.core_type = #tpu.core_type<tc>} {
    %c0 = arith.constant 0 : index
    %c0_0 = arith.constant 0 : index
    %0 = vector.load %arg0[%c0, %c0_0] : memref<80x1xi32, #tpu.memory_space<vmem>>, vector<80x1xi32>
    %1 = tpu.iota {dimensions = array<i32: 1>} : vector<80x64xi32>
    %2 = vector.broadcast %0 : vector<80x1xi32> to vector<80x64xi32>
    %3 = arith.cmpi eq, %2, %1 : vector<80x64xi32>
    %4 = arith.extui %3 : vector<80x64xi1> to vector<80x64xi32>
    %5 = arith.sitofp %4 : vector<80x64xi32> to vector<80x64xf32>
    %c0_1 = arith.constant 0 : index
    %c0_2 = arith.constant 0 : index
    %6 = vector.load %arg1[%c0_1, %c0_2] : memref<528x128xf32, #tpu.memory_space<vmem>>, vector<64x32xf32>
    %cst = arith.constant dense<0.000000e+00> : vector<80x32xf32>
    %7 = tpu.matmul %5, %6, %cst {dimension_numbers = #tpu.dot_dimension_numbers<[1], [0], [0], [1], [0, 0, 1, 1], [], []>} : vector<80x64xf32>, vector<64x32xf32>, vector<80x32xf32> -> vector<80x32xf32>
    %c512 = arith.constant 512 : index
    %c0_3 = arith.constant 0 : index
    %8 = vector.load %arg1[%c512, %c0_3] : memref<528x128xf32, #tpu.memory_space<vmem>>, vector<1x32xf32>
    %9 = vector.broadcast %8 : vector<1x32xf32> to vector<80x32xf32>
    %10 = arith.addf %7, %9 : vector<80x32xf32>
    %cst_4 = arith.constant 0.000000e+00 : f32
    %11 = vector.broadcast %cst_4 : f32 to vector<80x32xf32>
    %c1_i32 = arith.constant 1 : i32
    %12 = tpu.dynamic_rotate %10 by %c1_i32 dim 0 : vector<80x32xf32>, i32 -> vector<80x32xf32>
    %13 = tpu.concatenate %12, %10 in 1 : vector<80x32xf32>, vector<80x32xf32> -> vector<80x64xf32>
    %c64 = arith.constant 64 : index
    %c0_5 = arith.constant 0 : index
    %14 = vector.load %arg1[%c64, %c0_5] : memref<528x128xf32, #tpu.memory_space<vmem>>, vector<64x64xf32>
    %cst_6 = arith.constant dense<0.000000e+00> : vector<80x64xf32>
    %15 = tpu.matmul %13, %14, %cst_6 {dimension_numbers = #tpu.dot_dimension_numbers<[1], [0], [0], [1], [0, 0, 1, 1], [], []>} : vector<80x64xf32>, vector<64x64xf32>, vector<80x64xf32> -> vector<80x64xf32>
    %c513 = arith.constant 513 : index
    %c0_7 = arith.constant 0 : index
    %16 = vector.load %arg1[%c513, %c0_7] : memref<528x128xf32, #tpu.memory_space<vmem>>, vector<1x64xf32>
    %17 = vector.broadcast %16 : vector<1x64xf32> to vector<80x64xf32>
    %18 = arith.addf %15, %17 : vector<80x64xf32>
    %19 = vector.extract_strided_slice %18 {offsets = [0, 0], sizes = [80, 32], strides = [1, 1]} : vector<80x64xf32> to vector<80x32xf32>
    %20 = math.tanh %19 : vector<80x32xf32>
    %21 = vector.extract_strided_slice %18 {offsets = [0, 32], sizes = [80, 32], strides = [1, 1]} : vector<80x64xf32> to vector<80x32xf32>
    %22 = arith.negf %21 : vector<80x32xf32>
    %23 = math.exp %22 : vector<80x32xf32>
    %cst_8 = arith.constant 1.000000e+00 : f32
    %24 = vector.broadcast %cst_8 : f32 to vector<80x32xf32>
    %25 = arith.addf %24, %23 : vector<80x32xf32>
    %26 = arith.divf %24, %25 : vector<80x32xf32>
    %27 = arith.mulf %20, %26 : vector<80x32xf32>
    %c320 = arith.constant 320 : index
    %c0_9 = arith.constant 0 : index
    %28 = vector.load %arg1[%c320, %c0_9] : memref<528x128xf32, #tpu.memory_space<vmem>>, vector<32x32xf32>
    %cst_10 = arith.constant dense<0.000000e+00> : vector<80x32xf32>
    %29 = tpu.matmul %27, %28, %cst_10 {dimension_numbers = #tpu.dot_dimension_numbers<[1], [0], [0], [1], [0, 0, 1, 1], [], []>} : vector<80x32xf32>, vector<32x32xf32>, vector<80x32xf32> -> vector<80x32xf32>
    %c517 = arith.constant 517 : index
    %c0_11 = arith.constant 0 : index
    %30 = vector.load %arg1[%c517, %c0_11] : memref<528x128xf32, #tpu.memory_space<vmem>>, vector<1x32xf32>
    %31 = vector.broadcast %30 : vector<1x32xf32> to vector<80x32xf32>
    %32 = arith.addf %29, %31 : vector<80x32xf32>
    %33 = arith.addf %10, %32 : vector<80x32xf32>
    %34 = arith.addf %11, %32 : vector<80x32xf32>
    %c2_i32 = arith.constant 2 : i32
    %35 = tpu.dynamic_rotate %33 by %c2_i32 dim 0 : vector<80x32xf32>, i32 -> vector<80x32xf32>
    %36 = tpu.concatenate %35, %33 in 1 : vector<80x32xf32>, vector<80x32xf32> -> vector<80x64xf32>
    %c128 = arith.constant 128 : index
    %c0_12 = arith.constant 0 : index
    %37 = vector.load %arg1[%c128, %c0_12] : memref<528x128xf32, #tpu.memory_space<vmem>>, vector<64x64xf32>
    %cst_13 = arith.constant dense<0.000000e+00> : vector<80x64xf32>
    %38 = tpu.matmul %36, %37, %cst_13 {dimension_numbers = #tpu.dot_dimension_numbers<[1], [0], [0], [1], [0, 0, 1, 1], [], []>} : vector<80x64xf32>, vector<64x64xf32>, vector<80x64xf32> -> vector<80x64xf32>
    %c514 = arith.constant 514 : index
    %c0_14 = arith.constant 0 : index
    %39 = vector.load %arg1[%c514, %c0_14] : memref<528x128xf32, #tpu.memory_space<vmem>>, vector<1x64xf32>
    %40 = vector.broadcast %39 : vector<1x64xf32> to vector<80x64xf32>
    %41 = arith.addf %38, %40 : vector<80x64xf32>
    %42 = vector.extract_strided_slice %41 {offsets = [0, 0], sizes = [80, 32], strides = [1, 1]} : vector<80x64xf32> to vector<80x32xf32>
    %43 = math.tanh %42 : vector<80x32xf32>
    %44 = vector.extract_strided_slice %41 {offsets = [0, 32], sizes = [80, 32], strides = [1, 1]} : vector<80x64xf32> to vector<80x32xf32>
    %45 = arith.negf %44 : vector<80x32xf32>
    %46 = math.exp %45 : vector<80x32xf32>
    %cst_15 = arith.constant 1.000000e+00 : f32
    %47 = vector.broadcast %cst_15 : f32 to vector<80x32xf32>
    %48 = arith.addf %47, %46 : vector<80x32xf32>
    %49 = arith.divf %47, %48 : vector<80x32xf32>
    %50 = arith.mulf %43, %49 : vector<80x32xf32>
    %c352 = arith.constant 352 : index
    %c0_16 = arith.constant 0 : index
    %51 = vector.load %arg1[%c352, %c0_16] : memref<528x128xf32, #tpu.memory_space<vmem>>, vector<32x32xf32>
    %cst_17 = arith.constant dense<0.000000e+00> : vector<80x32xf32>
    %52 = tpu.matmul %50, %51, %cst_17 {dimension_numbers = #tpu.dot_dimension_numbers<[1], [0], [0], [1], [0, 0, 1, 1], [], []>} : vector<80x32xf32>, vector<32x32xf32>, vector<80x32xf32> -> vector<80x32xf32>
    %c518 = arith.constant 518 : index
    %c0_18 = arith.constant 0 : index
    %53 = vector.load %arg1[%c518, %c0_18] : memref<528x128xf32, #tpu.memory_space<vmem>>, vector<1x32xf32>
    %54 = vector.broadcast %53 : vector<1x32xf32> to vector<80x32xf32>
    %55 = arith.addf %52, %54 : vector<80x32xf32>
    %56 = arith.addf %33, %55 : vector<80x32xf32>
    %57 = arith.addf %34, %55 : vector<80x32xf32>
    %c4_i32 = arith.constant 4 : i32
    %58 = tpu.dynamic_rotate %56 by %c4_i32 dim 0 : vector<80x32xf32>, i32 -> vector<80x32xf32>
    %59 = tpu.concatenate %58, %56 in 1 : vector<80x32xf32>, vector<80x32xf32> -> vector<80x64xf32>
    %c192 = arith.constant 192 : index
    %c0_19 = arith.constant 0 : index
    %60 = vector.load %arg1[%c192, %c0_19] : memref<528x128xf32, #tpu.memory_space<vmem>>, vector<64x64xf32>
    %cst_20 = arith.constant dense<0.000000e+00> : vector<80x64xf32>
    %61 = tpu.matmul %59, %60, %cst_20 {dimension_numbers = #tpu.dot_dimension_numbers<[1], [0], [0], [1], [0, 0, 1, 1], [], []>} : vector<80x64xf32>, vector<64x64xf32>, vector<80x64xf32> -> vector<80x64xf32>
    %c515 = arith.constant 515 : index
    %c0_21 = arith.constant 0 : index
    %62 = vector.load %arg1[%c515, %c0_21] : memref<528x128xf32, #tpu.memory_space<vmem>>, vector<1x64xf32>
    %63 = vector.broadcast %62 : vector<1x64xf32> to vector<80x64xf32>
    %64 = arith.addf %61, %63 : vector<80x64xf32>
    %65 = vector.extract_strided_slice %64 {offsets = [0, 0], sizes = [80, 32], strides = [1, 1]} : vector<80x64xf32> to vector<80x32xf32>
    %66 = math.tanh %65 : vector<80x32xf32>
    %67 = vector.extract_strided_slice %64 {offsets = [0, 32], sizes = [80, 32], strides = [1, 1]} : vector<80x64xf32> to vector<80x32xf32>
    %68 = arith.negf %67 : vector<80x32xf32>
    %69 = math.exp %68 : vector<80x32xf32>
    %cst_22 = arith.constant 1.000000e+00 : f32
    %70 = vector.broadcast %cst_22 : f32 to vector<80x32xf32>
    %71 = arith.addf %70, %69 : vector<80x32xf32>
    %72 = arith.divf %70, %71 : vector<80x32xf32>
    %73 = arith.mulf %66, %72 : vector<80x32xf32>
    %c384 = arith.constant 384 : index
    %c0_23 = arith.constant 0 : index
    %74 = vector.load %arg1[%c384, %c0_23] : memref<528x128xf32, #tpu.memory_space<vmem>>, vector<32x32xf32>
    %cst_24 = arith.constant dense<0.000000e+00> : vector<80x32xf32>
    %75 = tpu.matmul %73, %74, %cst_24 {dimension_numbers = #tpu.dot_dimension_numbers<[1], [0], [0], [1], [0, 0, 1, 1], [], []>} : vector<80x32xf32>, vector<32x32xf32>, vector<80x32xf32> -> vector<80x32xf32>
    %c519 = arith.constant 519 : index
    %c0_25 = arith.constant 0 : index
    %76 = vector.load %arg1[%c519, %c0_25] : memref<528x128xf32, #tpu.memory_space<vmem>>, vector<1x32xf32>
    %77 = vector.broadcast %76 : vector<1x32xf32> to vector<80x32xf32>
    %78 = arith.addf %75, %77 : vector<80x32xf32>
    %79 = arith.addf %56, %78 : vector<80x32xf32>
    %80 = arith.addf %57, %78 : vector<80x32xf32>
    %c8_i32 = arith.constant 8 : i32
    %81 = tpu.dynamic_rotate %79 by %c8_i32 dim 0 : vector<80x32xf32>, i32 -> vector<80x32xf32>
    %82 = tpu.concatenate %81, %79 in 1 : vector<80x32xf32>, vector<80x32xf32> -> vector<80x64xf32>
    %c256 = arith.constant 256 : index
    %c0_26 = arith.constant 0 : index
    %83 = vector.load %arg1[%c256, %c0_26] : memref<528x128xf32, #tpu.memory_space<vmem>>, vector<64x64xf32>
    %cst_27 = arith.constant dense<0.000000e+00> : vector<80x64xf32>
    %84 = tpu.matmul %82, %83, %cst_27 {dimension_numbers = #tpu.dot_dimension_numbers<[1], [0], [0], [1], [0, 0, 1, 1], [], []>} : vector<80x64xf32>, vector<64x64xf32>, vector<80x64xf32> -> vector<80x64xf32>
    %c516 = arith.constant 516 : index
    %c0_28 = arith.constant 0 : index
    %85 = vector.load %arg1[%c516, %c0_28] : memref<528x128xf32, #tpu.memory_space<vmem>>, vector<1x64xf32>
    %86 = vector.broadcast %85 : vector<1x64xf32> to vector<80x64xf32>
    %87 = arith.addf %84, %86 : vector<80x64xf32>
    %88 = vector.extract_strided_slice %87 {offsets = [0, 0], sizes = [80, 32], strides = [1, 1]} : vector<80x64xf32> to vector<80x32xf32>
    %89 = math.tanh %88 : vector<80x32xf32>
    %90 = vector.extract_strided_slice %87 {offsets = [0, 32], sizes = [80, 32], strides = [1, 1]} : vector<80x64xf32> to vector<80x32xf32>
    %91 = arith.negf %90 : vector<80x32xf32>
    %92 = math.exp %91 : vector<80x32xf32>
    %cst_29 = arith.constant 1.000000e+00 : f32
    %93 = vector.broadcast %cst_29 : f32 to vector<80x32xf32>
    %94 = arith.addf %93, %92 : vector<80x32xf32>
    %95 = arith.divf %93, %94 : vector<80x32xf32>
    %96 = arith.mulf %89, %95 : vector<80x32xf32>
    %c416 = arith.constant 416 : index
    %c0_30 = arith.constant 0 : index
    %97 = vector.load %arg1[%c416, %c0_30] : memref<528x128xf32, #tpu.memory_space<vmem>>, vector<32x32xf32>
    %cst_31 = arith.constant dense<0.000000e+00> : vector<80x32xf32>
    %98 = tpu.matmul %96, %97, %cst_31 {dimension_numbers = #tpu.dot_dimension_numbers<[1], [0], [0], [1], [0, 0, 1, 1], [], []>} : vector<80x32xf32>, vector<32x32xf32>, vector<80x32xf32> -> vector<80x32xf32>
    %c520 = arith.constant 520 : index
    %c0_32 = arith.constant 0 : index
    %99 = vector.load %arg1[%c520, %c0_32] : memref<528x128xf32, #tpu.memory_space<vmem>>, vector<1x32xf32>
    %100 = vector.broadcast %99 : vector<1x32xf32> to vector<80x32xf32>
    %101 = arith.addf %98, %100 : vector<80x32xf32>
    %102 = arith.addf %80, %101 : vector<80x32xf32>
    %cst_33 = arith.constant 0.000000e+00 : f32
    %103 = vector.broadcast %cst_33 : f32 to vector<80x32xf32>
    %104 = arith.maximumf %102, %103 : vector<80x32xf32>
    %c448 = arith.constant 448 : index
    %c0_34 = arith.constant 0 : index
    %105 = vector.load %arg1[%c448, %c0_34] : memref<528x128xf32, #tpu.memory_space<vmem>>, vector<32x32xf32>
    %cst_35 = arith.constant dense<0.000000e+00> : vector<80x32xf32>
    %106 = tpu.matmul %104, %105, %cst_35 {dimension_numbers = #tpu.dot_dimension_numbers<[1], [0], [0], [1], [0, 0, 1, 1], [], []>} : vector<80x32xf32>, vector<32x32xf32>, vector<80x32xf32> -> vector<80x32xf32>
    %c521 = arith.constant 521 : index
    %c0_36 = arith.constant 0 : index
    %107 = vector.load %arg1[%c521, %c0_36] : memref<528x128xf32, #tpu.memory_space<vmem>>, vector<1x32xf32>
    %108 = vector.broadcast %107 : vector<1x32xf32> to vector<80x32xf32>
    %109 = arith.addf %106, %108 : vector<80x32xf32>
    %cst_37 = arith.constant 0.000000e+00 : f32
    %110 = vector.broadcast %cst_37 : f32 to vector<80x32xf32>
    %111 = arith.maximumf %109, %110 : vector<80x32xf32>
    %c480 = arith.constant 480 : index
    %c0_38 = arith.constant 0 : index
    %112 = vector.load %arg1[%c480, %c0_38] : memref<528x128xf32, #tpu.memory_space<vmem>>, vector<32x128xf32>
    %cst_39 = arith.constant dense<0.000000e+00> : vector<80x128xf32>
    %113 = tpu.matmul %111, %112, %cst_39 {dimension_numbers = #tpu.dot_dimension_numbers<[1], [0], [0], [1], [0, 0, 1, 1], [], []>} : vector<80x32xf32>, vector<32x128xf32>, vector<80x128xf32> -> vector<80x128xf32>
    %c522 = arith.constant 522 : index
    %c0_40 = arith.constant 0 : index
    %114 = vector.load %arg1[%c522, %c0_40] : memref<528x128xf32, #tpu.memory_space<vmem>>, vector<1x128xf32>
    %115 = vector.broadcast %114 : vector<1x128xf32> to vector<80x128xf32>
    %116 = arith.addf %113, %115 : vector<80x128xf32>
    %c0_41 = arith.constant 0 : index
    %c0_42 = arith.constant 0 : index
    %117 = vector.load %arg2[%c0_41, %c0_42] : memref<80x128xf32, #tpu.memory_space<vmem>>, vector<80x128xf32>
    tpu.vector_store %arg2[%c0_41, %c0_42], %116 {strides = array<i32>} : memref<80x128xf32, #tpu.memory_space<vmem>>, vector<80x128xf32>,
    return
  }
}

</mosaic_0001>

<llo_original>
// kernel: wavenet_forward.1
$region0: #{wavenet_forward.1}
  #allocation0 [shape = 'u32[]', space=smem, size = 0x4, offset = 0x4, fixed_abs, tag = 'smem constant byte address 0x4 - core index']
  #allocation1 [shape = 'u32[144,128]{1,0:T(1,128)}', space=vmem, size = 0x12000, scoped, tag = 'internal scratch']
  %s0 = inlined_call_operand.vmem [shape: s32[80,1], index: 0, kind: input, shape index: {}]
  %s1 = inlined_call_operand.vmem [shape: f32[528,128], index: 1, kind: input, shape index: {}]
  %s2 = inlined_call_operand.vmem [shape: f32[80,128], index: 2, kind: output, shape index: {}]
  %s3 = sld [smem:[#allocation0]]
  $region18: #{wavenet_forward.1} parent=0
    _
  %s5 = ssub.s32 1, %s3
  %s6 = scalar_select 0, %s5, %s3
  // Predicated region
  $region2: #{wavenet_forward.1} parent=0 // pred_check
    _
  $region3: #{wavenet_forward.1} parent=0 // pred_check_branch
    %8 = sbr.rel (0) target = $region5
  $region4: #{wavenet_forward.1} parent=0 // pred_region
    _
  $region5: #{wavenet_forward.1} parent=0 // pred_fallthru
    _
  // Predicated region
  $region6: #{wavenet_forward.1} parent=0 // pred_check
    _
  $region7: #{wavenet_forward.1} parent=0 // pred_check_branch
    %10 = sbr.rel (0) target = $region9
  $region8: #{wavenet_forward.1} parent=0 // pred_region
    _
  $region9: #{wavenet_forward.1} parent=0 // pred_fallthru
    _
  %v11 = vld [vmem:[%s0] sm:$0xff]
  %v12 = vld [vmem:[%s0 + $0x8] sm:$0xff]
  %v13 = vld [vmem:[%s0 + $0x10] sm:$0xff]
  %v14 = vld [vmem:[%s0 + $0x18] sm:$0xff]
  %v15 = vld [vmem:[%s0 + $0x20] sm:$0xff]
  %v16 = vld [vmem:[%s0 + $0x28] sm:$0xff]
  %v17 = vld [vmem:[%s0 + $0x30] sm:$0xff]
  %v18 = vld [vmem:[%s0 + $0x38] sm:$0xff]
  %v19 = vld [vmem:[%s0 + $0x40] sm:$0xff]
  %v20 = vld [vmem:[%s0 + $0x48] sm:$0xff]
  %v21 = vlaneseq
  %v22 = vand.u32 %v21, 127
  %23 = vset.pattern.permute.xlu0 0
  %24 = vperm.xlu0 %23, %v11
  %v25 = vpop.permute.xlu0 %24
  %26 = vset.pattern.permute.xlu0 0
  %27 = vperm.xlu0 %26, %v12
  %v28 = vpop.permute.xlu0 %27
  %29 = vset.pattern.permute.xlu0 0
  %30 = vperm.xlu0 %29, %v13
  %v31 = vpop.permute.xlu0 %30
  %32 = vset.pattern.permute.xlu0 0
  %33 = vperm.xlu0 %32, %v14
  %v34 = vpop.permute.xlu0 %33
  %35 = vset.pattern.permute.xlu0 0
  %36 = vperm.xlu0 %35, %v15
  %v37 = vpop.permute.xlu0 %36
  %38 = vset.pattern.permute.xlu0 0
  %39 = vperm.xlu0 %38, %v16
  %v40 = vpop.permute.xlu0 %39
  %41 = vset.pattern.permute.xlu0 0
  %42 = vperm.xlu0 %41, %v17
  %v43 = vpop.permute.xlu0 %42
  %44 = vset.pattern.permute.xlu0 0
  %45 = vperm.xlu0 %44, %v18
  %v46 = vpop.permute.xlu0 %45
  %47 = vset.pattern.permute.xlu0 0
  %48 = vperm.xlu0 %47, %v19
  %v49 = vpop.permute.xlu0 %48
  %50 = vset.pattern.permute.xlu0 0
  %51 = vperm.xlu0 %50, %v20
  %v52 = vpop.permute.xlu0 %51
  %vm53 = vcmp.eq.s32.totalorder %v25, %v22
  %vm54 = vcmp.eq.s32.totalorder %v28, %v22
  %vm55 = vcmp.eq.s32.totalorder %v31, %v22
  %vm56 = vcmp.eq.s32.totalorder %v34, %v22
  %vm57 = vcmp.eq.s32.totalorder %v37, %v22
  %vm58 = vcmp.eq.s32.totalorder %v40, %v22
  %vm59 = vcmp.eq.s32.totalorder %v43, %v22
  %vm60 = vcmp.eq.s32.totalorder %v46, %v22
  %vm61 = vcmp.eq.s32.totalorder %v49, %v22
  %vm62 = vcmp.eq.s32.totalorder %v52, %v22
  %v63 = vsel %vm53, 1, 0
  %v64 = vsel %vm54, 1, 0
  %v65 = vsel %vm55, 1, 0
  %v66 = vsel %vm56, 1, 0
  %v67 = vsel %vm57, 1, 0
  %v68 = vsel %vm58, 1, 0
  %v69 = vsel %vm59, 1, 0
  %v70 = vsel %vm60, 1, 0
  %v71 = vsel %vm61, 1, 0
  %v72 = vsel %vm62, 1, 0
  %v73 = vcvt.s32.f32 %v63
  %v74 = vcvt.s32.f32 %v64
  %v75 = vcvt.s32.f32 %v65
  %v76 = vcvt.s32.f32 %v66
  %v77 = vcvt.s32.f32 %v67
  %v78 = vcvt.s32.f32 %v68
  %v79 = vcvt.s32.f32 %v69
  %v80 = vcvt.s32.f32 %v70
  %v81 = vcvt.s32.f32 %v71
  %v82 = vcvt.s32.f32 %v72
  %v83 = vld [vmem:[%s1] sm:$0xff]
  %v84 = vld [vmem:[%s1 + $0x8] sm:$0xff]
  %v85 = vld [vmem:[%s1 + $0x10] sm:$0xff]
  %v86 = vld [vmem:[%s1 + $0x18] sm:$0xff]
  %v87 = vld [vmem:[%s1 + $0x20] sm:$0xff]
  %v88 = vld [vmem:[%s1 + $0x28] sm:$0xff]
  %v89 = vld [vmem:[%s1 + $0x30] sm:$0xff]
  %v90 = vld [vmem:[%s1 + $0x38] sm:$0xff]
  %v91 = vld [vmem:[%s1 + $0x200] sm:$0x1]
  %v92 = vlaneseq
  %v93 = vshrl.u32 %v92, 7
  %v94 = vsub.s32 0, %v93
  %v95 = vrot.slane %v91, %v94
  %vm96 = vcmask 523264
  %v98 = vsel %vm96, %v73, 0
  %v101 = vsel %vm96, %v74, 0
  %v104 = vsel %vm96, %v75, 0
  %v107 = vsel %vm96, %v76, 0
  %v110 = vsel %vm96, %v77, 0
  %v113 = vsel %vm96, %v78, 0
  %v116 = vsel %vm96, %v79, 0
  %v119 = vsel %vm96, %v80, 0
  %v122 = vsel %vm96, %v81, 0
  %v125 = vsel %vm96, %v82, 0
  %127 = vmatprep.subr.mxu0 0.0
  %128 = vmatpush1.msra.mxu0 %v83
  %129 = vmatprep.subr.mxu0 0.0
  %130 = vmatpush1.msra.mxu0 %v84
  %131 = vmatprep.subr.mxu0 0.0
  %132 = vmatpush1.msra.mxu0 %v85
  %133 = vmatprep.subr.mxu0 0.0
  %134 = vmatpush1.msra.mxu0 %v86
  %135 = vmatprep.subr.mxu0 0.0
  %136 = vmatpush1.msra.mxu0 %v87
  %137 = vmatprep.subr.mxu0 0.0
  %138 = vmatpush1.msra.mxu0 %v88
  %139 = vmatprep.subr.mxu0 0.0
  %140 = vmatpush1.msra.mxu0 %v89
  %141 = vmatprep.subr.mxu0 0.0
  %142 = vmatpush1.msra.mxu0 %v90
  %143 = vmatprep.subr.mxu0 0.0
  %144 = vmatpush1.msra.mxu0 0.0
  %145 = vmatprep.subr.mxu0 0.0
  %146 = vmatpush1.msra.mxu0 0.0
  %147 = vmatprep.subr.mxu0 0.0
  %148 = vmatpush1.msra.mxu0 0.0
  %149 = vmatprep.subr.mxu0 0.0
  %150 = vmatpush1.msra.mxu0 0.0
  %151 = vmatprep.subr.mxu0 0.0
  %152 = vmatpush1.msra.mxu0 0.0
  %153 = vmatprep.subr.mxu0 0.0
  %154 = vmatpush1.msra.mxu0 0.0
  %155 = vmatprep.subr.mxu0 0.0
  %156 = vmatpush1.msra.mxu0 0.0
  %157 = vmatprep.subr.mxu0 0.0
  %158 = vmatpush1.msra.mxu0 0.0
  %159 = vmatprep.subr.mxu0 0.0
  %160 = vmatpush1.msra.mxu0 0.0
  %161 = vmatprep.subr.mxu0 0.0
  %162 = vmatpush1.msra.mxu0 0.0
  %163 = vmatprep.subr.mxu0 0.0
  %164 = vmatpush1.msra.mxu0 0.0
  %165 = vmatprep.subr.mxu0 0.0
  %166 = vmatpush1.msra.mxu0 0.0
  %167 = vmatprep.subr.mxu0 0.0
  %168 = vmatpush1.msra.mxu0 0.0
  %169 = vmatprep.subr.mxu0 0.0
  %170 = vmatpush1.msra.mxu0 0.0
  %171 = vmatprep.subr.mxu0 0.0
  %172 = vmatpush1.msra.mxu0 0.0
  %173 = vmatprep.subr.mxu0 0.0
  %174 = vmatpush1.msra.mxu0 0.0
  %175 = vmatprep.subr.mxu0 0.0
  %176 = vmatpush1.msra.mxu0 0.0
  %177 = vmatprep.subr.mxu0 0.0
  %178 = vmatpush1.msra.mxu0 0.0
  %179 = vmatprep.subr.mxu0 0.0
  %180 = vmatpush1.msra.mxu0 0.0
  %181 = vmatprep.subr.mxu0 0.0
  %182 = vmatpush1.msra.mxu0 0.0
  %183 = vmatprep.subr.mxu0 0.0
  %184 = vmatpush1.msra.mxu0 0.0
  %185 = vmatprep.subr.mxu0 0.0
  %186 = vmatpush1.msra.mxu0 0.0
  %187 = vmatprep.subr.mxu0 0.0
  %188 = vmatpush1.msra.mxu0 0.0
  %189 = vmatprep.subr.mxu0 0.0
  %190 = vmatpush1.msra.mxu0 0.0
  %191 = vmatprep.mubr.f32.mxu0 0.0
  %192 = vmatmul.mubr.f32.gmra.mrb[0].mxu0 %v98
  %v193 = vpop.f32.mrb[0].mxu0
  %v194 = vadd.f32 %v95, %v193
  %v195 = vpop.f32.mrb[0].mxu0
  %196 = vmatprep.mubr.f32.mxu0 0.0
  %197 = vmatmul.mubr.f32.gmra.mrb[0].mxu0 %v101
  %v198 = vpop.f32.mrb[0].mxu0
  %v199 = vadd.f32 %v95, %v198
  %v200 = vpop.f32.mrb[0].mxu0
  %201 = vmatprep.mubr.f32.mxu0 0.0
  %202 = vmatmul.mubr.f32.gmra.mrb[0].mxu0 %v104
  %v203 = vpop.f32.mrb[0].mxu0
  %v204 = vadd.f32 %v95, %v203
  %v205 = vpop.f32.mrb[0].mxu0
  %206 = vmatprep.mubr.f32.mxu0 0.0
  %207 = vmatmul.mubr.f32.gmra.mrb[0].mxu0 %v107
  %v208 = vpop.f32.mrb[0].mxu0
  %v209 = vadd.f32 %v95, %v208
  %v210 = vpop.f32.mrb[0].mxu0
  %211 = vmatprep.mubr.f32.mxu0 0.0
  %212 = vmatmul.mubr.f32.gmra.mrb[0].mxu0 %v110
  %v213 = vpop.f32.mrb[0].mxu0
  %v214 = vadd.f32 %v95, %v213
  %v215 = vpop.f32.mrb[0].mxu0
  %216 = vmatprep.mubr.f32.mxu0 0.0
  %217 = vmatmul.mubr.f32.gmra.mrb[0].mxu0 %v113
  %v218 = vpop.f32.mrb[0].mxu0
  %v219 = vadd.f32 %v95, %v218
  %v220 = vpop.f32.mrb[0].mxu0
  %221 = vmatprep.mubr.f32.mxu0 0.0
  %222 = vmatmul.mubr.f32.gmra.mrb[0].mxu0 %v116
  %v223 = vpop.f32.mrb[0].mxu0
  %v224 = vadd.f32 %v95, %v223
  %v225 = vpop.f32.mrb[0].mxu0
  %226 = vmatprep.mubr.f32.mxu0 0.0
  %227 = vmatmul.mubr.f32.gmra.mrb[0].mxu0 %v119
  %v228 = vpop.f32.mrb[0].mxu0
  %v229 = vadd.f32 %v95, %v228
  %v230 = vpop.f32.mrb[0].mxu0
  %231 = vmatprep.mubr.f32.mxu0 0.0
  %232 = vmatmul.mubr.f32.gmra.mrb[0].mxu0 %v122
  %v233 = vpop.f32.mrb[0].mxu0
  %v234 = vadd.f32 %v95, %v233
  %v235 = vpop.f32.mrb[0].mxu0
  %236 = vmatprep.mubr.f32.mxu0 0.0
  %237 = vmatmul.mubr.f32.gmra.mrb[0].mxu0 %v125
  %v238 = vpop.f32.mrb[0].mxu0
  %v239 = vadd.f32 %v95, %v238
  %v240 = vpop.f32.mrb[0].mxu0
  %241 = vdwg.mxu0
  %v242 = vrot.slane %v194, 7
  %v243 = vrot.slane %v199, 7
  %v244 = vrot.slane %v204, 7
  %v245 = vrot.slane %v209, 7
  %v246 = vrot.slane %v214, 7
  %v247 = vrot.slane %v219, 7
  %v248 = vrot.slane %v224, 7
  %v249 = vrot.slane %v229, 7
  %v250 = vrot.slane %v234, 7
  %v251 = vrot.slane %v239, 7
  %v252 = vlaneseq
  %v253 = vshrl.u32 %v252, 7
  %vm254 = vcmp.lt.s32.totalorder %v253, 1
  %v255 = vsel %vm254, %v250, %v251
  %v256 = vsel %vm254, %v249, %v250
  %v257 = vsel %vm254, %v248, %v249
  %v258 = vsel %vm254, %v247, %v248
  %v259 = vsel %vm254, %v246, %v247
  %v260 = vsel %vm254, %v245, %v246
  %v261 = vsel %vm254, %v244, %v245
  %v262 = vsel %vm254, %v243, %v244
  %v263 = vsel %vm254, %v242, %v243
  %v264 = vsel %vm254, %v251, %v242
  %275 = vrot.lane.b32.xlu0 %v194, 32
  %v276 = vpop.permute.xlu0 %275
  %277 = vrot.lane.b32.xlu0 %v199, 32
  %v278 = vpop.permute.xlu0 %277
  %279 = vrot.lane.b32.xlu0 %v204, 32
  %v280 = vpop.permute.xlu0 %279
  %281 = vrot.lane.b32.xlu0 %v209, 32
  %v282 = vpop.permute.xlu0 %281
  %283 = vrot.lane.b32.xlu0 %v214, 32
  %v284 = vpop.permute.xlu0 %283
  %285 = vrot.lane.b32.xlu0 %v219, 32
  %v286 = vpop.permute.xlu0 %285
  %287 = vrot.lane.b32.xlu0 %v224, 32
  %v288 = vpop.permute.xlu0 %287
  %289 = vrot.lane.b32.xlu0 %v229, 32
  %v290 = vpop.permute.xlu0 %289
  %291 = vrot.lane.b32.xlu0 %v234, 32
  %v292 = vpop.permute.xlu0 %291
  %293 = vrot.lane.b32.xlu0 %v239, 32
  %v294 = vpop.permute.xlu0 %293
  %vm305 = vcmask 261120
  %v306 = vsel %vm305, %v264, %v276
  %v307 = vsel %vm305, %v263, %v278
  %v308 = vsel %vm305, %v262, %v280
  %v309 = vsel %vm305, %v261, %v282
  %v310 = vsel %vm305, %v260, %v284
  %v311 = vsel %vm305, %v259, %v286
  %v312 = vsel %vm305, %v258, %v288
  %v313 = vsel %vm305, %v257, %v290
  %v314 = vsel %vm305, %v256, %v292
  %v315 = vsel %vm305, %v255, %v294
  %v316 = vld [vmem:[%s1 + $0x40] sm:$0xff]
  %v317 = vld [vmem:[%s1 + $0x48] sm:$0xff]
  %v318 = vld [vmem:[%s1 + $0x50] sm:$0xff]
  %v319 = vld [vmem:[%s1 + $0x58] sm:$0xff]
  %v320 = vld [vmem:[%s1 + $0x60] sm:$0xff]
  %v321 = vld [vmem:[%s1 + $0x68] sm:$0xff]
  %v322 = vld [vmem:[%s1 + $0x70] sm:$0xff]
  %v323 = vld [vmem:[%s1 + $0x78] sm:$0xff]
  %v324 = vld [vmem:[%s1 + $0x201] sm:$0x1]
  %v325 = vlaneseq
  %v326 = vshrl.u32 %v325, 7
  %v327 = vsub.s32 0, %v326
  %v328 = vrot.slane %v324, %v327
  %v330 = vsel %vm96, %v306, 0
  %v333 = vsel %vm96, %v307, 0
  %v336 = vsel %vm96, %v308, 0
  %v339 = vsel %vm96, %v309, 0
  %v342 = vsel %vm96, %v310, 0
  %v345 = vsel %vm96, %v311, 0
  %v348 = vsel %vm96, %v312, 0
  %v351 = vsel %vm96, %v313, 0
  %v354 = vsel %vm96, %v314, 0
  %v357 = vsel %vm96, %v315, 0
  %359 = vmatprep.subr.mxu0 0.0
  %360 = vmatpush1.msra.mxu0 %v316
  %361 = vmatprep.subr.mxu0 0.0
  %362 = vmatpush1.msra.mxu0 %v317
  %363 = vmatprep.subr.mxu0 0.0
  %364 = vmatpush1.msra.mxu0 %v318
  %365 = vmatprep.subr.mxu0 0.0
  %366 = vmatpush1.msra.mxu0 %v319
  %367 = vmatprep.subr.mxu0 0.0
  %368 = vmatpush1.msra.mxu0 %v320
  %369 = vmatprep.subr.mxu0 0.0
  %370 = vmatpush1.msra.mxu0 %v321
  %371 = vmatprep.subr.mxu0 0.0
  %372 = vmatpush1.msra.mxu0 %v322
  %373 = vmatprep.subr.mxu0 0.0
  %374 = vmatpush1.msra.mxu0 %v323
  %375 = vmatprep.subr.mxu0 0.0
  %376 = vmatpush1.msra.mxu0 0.0
  %377 = vmatprep.subr.mxu0 0.0
  %378 = vmatpush1.msra.mxu0 0.0
  %379 = vmatprep.subr.mxu0 0.0
  %380 = vmatpush1.msra.mxu0 0.0
  %381 = vmatprep.subr.mxu0 0.0
  %382 = vmatpush1.msra.mxu0 0.0
  %383 = vmatprep.subr.mxu0 0.0
  %384 = vmatpush1.msra.mxu0 0.0
  %385 = vmatprep.subr.mxu0 0.0
  %386 = vmatpush1.msra.mxu0 0.0
  %387 = vmatprep.subr.mxu0 0.0
  %388 = vmatpush1.msra.mxu0 0.0
  %389 = vmatprep.subr.mxu0 0.0
  %390 = vmatpush1.msra.mxu0 0.0
  %391 = vmatprep.subr.mxu0 0.0
  %392 = vmatpush1.msra.mxu0 0.0
  %393 = vmatprep.subr.mxu0 0.0
  %394 = vmatpush1.msra.mxu0 0.0
  %395 = vmatprep.subr.mxu0 0.0
  %396 = vmatpush1.msra.mxu0 0.0
  %397 = vmatprep.subr.mxu0 0.0
  %398 = vmatpush1.msra.mxu0 0.0
  %399 = vmatprep.subr.mxu0 0.0
  %400 = vmatpush1.msra.mxu0 0.0
  %401 = vmatprep.subr.mxu0 0.0
  %402 = vmatpush1.msra.mxu0 0.0
  %403 = vmatprep.subr.mxu0 0.0
  %404 = vmatpush1.msra.mxu0 0.0
  %405 = vmatprep.subr.mxu0 0.0
  %406 = vmatpush1.msra.mxu0 0.0
  %407 = vmatprep.subr.mxu0 0.0
  %408 = vmatpush1.msra.mxu0 0.0
  %409 = vmatprep.subr.mxu0 0.0
  %410 = vmatpush1.msra.mxu0 0.0
  %411 = vmatprep.subr.mxu0 0.0
  %412 = vmatpush1.msra.mxu0 0.0
  %413 = vmatprep.subr.mxu0 0.0
  %414 = vmatpush1.msra.mxu0 0.0
  %415 = vmatprep.subr.mxu0 0.0
  %416 = vmatpush1.msra.mxu0 0.0
  %417 = vmatprep.subr.mxu0 0.0
  %418 = vmatpush1.msra.mxu0 0.0
  %419 = vmatprep.subr.mxu0 0.0
  %420 = vmatpush1.msra.mxu0 0.0
  %421 = vmatprep.subr.mxu0 0.0
  %422 = vmatpush1.msra.mxu0 0.0
  %423 = vmatprep.mubr.f32.mxu0 0.0
  %424 = vmatmul.mubr.f32.gmra.mrb[0].mxu0 %v330
  %v425 = vpop.f32.mrb[0].mxu0
  %v426 = vadd.f32 %v328, %v425
  %v427 = vpop.f32.mrb[0].mxu0
  %428 = vmatprep.mubr.f32.mxu0 0.0
  %429 = vmatmul.mubr.f32.gmra.mrb[0].mxu0 %v333
  %v430 = vpop.f32.mrb[0].mxu0
  %v431 = vadd.f32 %v328, %v430
  %v432 = vpop.f32.mrb[0].mxu0
  %433 = vmatprep.mubr.f32.mxu0 0.0
  %434 = vmatmul.mubr.f32.gmra.mrb[0].mxu0 %v336
  %v435 = vpop.f32.mrb[0].mxu0
  %v436 = vadd.f32 %v328, %v435
  %v437 = vpop.f32.mrb[0].mxu0
  %438 = vmatprep.mubr.f32.mxu0 0.0
  %439 = vmatmul.mubr.f32.gmra.mrb[0].mxu0 %v339
  %v440 = vpop.f32.mrb[0].mxu0
  %v441 = vadd.f32 %v328, %v440
  %v442 = vpop.f32.mrb[0].mxu0
  %443 = vmatprep.mubr.f32.mxu0 0.0
  %444 = vmatmul.mubr.f32.gmra.mrb[0].mxu0 %v342
  %v445 = vpop.f32.mrb[0].mxu0
  %v446 = vadd.f32 %v328, %v445
  %v447 = vpop.f32.mrb[0].mxu0
  %448 = vmatprep.mubr.f32.mxu0 0.0
  %449 = vmatmul.mubr.f32.gmra.mrb[0].mxu0 %v345
  %v450 = vpop.f32.mrb[0].mxu0
  %v451 = vadd.f32 %v328, %v450
  %v452 = vpop.f32.mrb[0].mxu0
  %453 = vmatprep.mubr.f32.mxu0 0.0
  %454 = vmatmul.mubr.f32.gmra.mrb[0].mxu0 %v348
  %v455 = vpop.f32.mrb[0].mxu0
  %v456 = vadd.f32 %v328, %v455
  %v457 = vpop.f32.mrb[0].mxu0
  %458 = vmatprep.mubr.f32.mxu0 0.0
  %459 = vmatmul.mubr.f32.gmra.mrb[0].mxu0 %v351
  %v460 = vpop.f32.mrb[0].mxu0
  %v461 = vadd.f32 %v328, %v460
  %v462 = vpop.f32.mrb[0].mxu0
  %463 = vmatprep.mubr.f32.mxu0 0.0
  %464 = vmatmul.mubr.f32.gmra.mrb[0].mxu0 %v354
  %v465 = vpop.f32.mrb[0].mxu0
  %v466 = vadd.f32 %v328, %v465
  %v467 = vpop.f32.mrb[0].mxu0
  %468 = vmatprep.mubr.f32.mxu0 0.0
  %469 = vmatmul.mubr.f32.gmra.mrb[0].mxu0 %v357
  %v470 = vpop.f32.mrb[0].mxu0
  %v471 = vadd.f32 %v328, %v470
  %v472 = vpop.f32.mrb[0].mxu0
  %473 = vdwg.mxu0
  %v474 = vtanh.pop %v426
  %v475 = vtanh.pop %v431
  %v476 = vtanh.pop %v436
  %v477 = vtanh.pop %v441
  %v478 = vtanh.pop %v446
  %v479 = vtanh.pop %v451
  %v480 = vtanh.pop %v456
  %v481 = vtanh.pop %v461
  %v482 = vtanh.pop %v466
  %v483 = vtanh.pop %v471
  %v484 = vxor.u32 %v426, 2147483648
  %v485 = vxor.u32 %v431, 2147483648
  %v486 = vxor.u32 %v436, 2147483648
  %v487 = vxor.u32 %v441, 2147483648
  %v488 = vxor.u32 %v446, 2147483648
  %v489 = vxor.u32 %v451, 2147483648
  %v490 = vxor.u32 %v456, 2147483648
  %v491 = vxor.u32 %v461, 2147483648
  %v492 = vxor.u32 %v466, 2147483648
  %v493 = vxor.u32 %v471, 2147483648
  %v494 = vmul.f32 %v484, 1.442695
  %v495 = vpow.pop %v494
  %v496 = vmul.f32 %v485, 1.442695
  %v497 = vpow.pop %v496
  %v498 = vmul.f32 %v486, 1.442695
  %v499 = vpow.pop %v498
  %v500 = vmul.f32 %v487, 1.442695
  %v501 = vpow.pop %v500
  %v502 = vmul.f32 %v488, 1.442695
  %v503 = vpow.pop %v502
  %v504 = vmul.f32 %v489, 1.442695
  %v505 = vpow.pop %v504
  %v506 = vmul.f32 %v490, 1.442695
  %v507 = vpow.pop %v506
  %v508 = vmul.f32 %v491, 1.442695
  %v509 = vpow.pop %v508
  %v510 = vmul.f32 %v492, 1.442695
  %v511 = vpow.pop %v510
  %v512 = vmul.f32 %v493, 1.442695
  %v513 = vpow.pop %v512
  %v514 = vadd.f32 %v495, 1.0
  %v515 = vadd.f32 %v497, 1.0
  %v516 = vadd.f32 %v499, 1.0
  %v517 = vadd.f32 %v501, 1.0
  %v518 = vadd.f32 %v503, 1.0
  %v519 = vadd.f32 %v505, 1.0
  %v520 = vadd.f32 %v507, 1.0
  %v521 = vadd.f32 %v509, 1.0
  %v522 = vadd.f32 %v511, 1.0
  %v523 = vadd.f32 %v513, 1.0
  %v524 = vrcp.pop %v514
  %v525 = vmul.f32 1.0, %v524
  %v526 = vrcp.pop %v515
  %v527 = vmul.f32 1.0, %v526
  %v528 = vrcp.pop %v516
  %v529 = vmul.f32 1.0, %v528
  %v530 = vrcp.pop %v517
  %v531 = vmul.f32 1.0, %v530
  %v532 = vrcp.pop %v518
  %v533 = vmul.f32 1.0, %v532
  %v534 = vrcp.pop %v519
  %v535 = vmul.f32 1.0, %v534
  %v536 = vrcp.pop %v520
  %v537 = vmul.f32 1.0, %v536
  %v538 = vrcp.pop %v521
  %v539 = vmul.f32 1.0, %v538
  %v540 = vrcp.pop %v522
  %v541 = vmul.f32 1.0, %v540
  %v542 = vrcp.pop %v523
  %v543 = vmul.f32 1.0, %v542
  %554 = vrot.lane.b32.xlu0 %v525, 96
  %v555 = vpop.permute.xlu0 %554
  %556 = vrot.lane.b32.xlu0 %v527, 96
  %v557 = vpop.permute.xlu0 %556
  %558 = vrot.lane.b32.xlu0 %v529, 96
  %v559 = vpop.permute.xlu0 %558
  %560 = vrot.lane.b32.xlu0 %v531, 96
  %v561 = vpop.permute.xlu0 %560
  %562 = vrot.lane.b32.xlu0 %v533, 96
  %v563 = vpop.permute.xlu0 %562
  %564 = vrot.lane.b32.xlu0 %v535, 96
  %v565 = vpop.permute.xlu0 %564
  %566 = vrot.lane.b32.xlu0 %v537, 96
  %v567 = vpop.permute.xlu0 %566
  %568 = vrot.lane.b32.xlu0 %v539, 96
  %v569 = vpop.permute.xlu0 %568
  %570 = vrot.lane.b32.xlu0 %v541, 96
  %v571 = vpop.permute.xlu0 %570
  %572 = vrot.lane.b32.xlu0 %v543, 96
  %v573 = vpop.permute.xlu0 %572
  %v584 = vmul.f32 %v474, %v555
  %v585 = vmul.f32 %v475, %v557
  %v586 = vmul.f32 %v476, %v559
  %v587 = vmul.f32 %v477, %v561
  %v588 = vmul.f32 %v478, %v563
  %v589 = vmul.f32 %v479, %v565
  %v590 = vmul.f32 %v480, %v567
  %v591 = vmul.f32 %v481, %v569
  %v592 = vmul.f32 %v482, %v571
  %v593 = vmul.f32 %v483, %v573
  %v594 = vld [vmem:[%s1 + $0x140] sm:$0xff]
  %v595 = vld [vmem:[%s1 + $0x148] sm:$0xff]
  %v596 = vld [vmem:[%s1 + $0x150] sm:$0xff]
  %v597 = vld [vmem:[%s1 + $0x158] sm:$0xff]
  %v598 = vld [vmem:[%s1 + $0x205] sm:$0x1]
  %v599 = vlaneseq
  %v600 = vshrl.u32 %v599, 7
  %v601 = vsub.s32 0, %v600
  %v602 = vrot.slane %v598, %v601
  %v604 = vsel %vm305, %v584, 0
  %v607 = vsel %vm305, %v585, 0
  %v610 = vsel %vm305, %v586, 0
  %v613 = vsel %vm305, %v587, 0
  %v616 = vsel %vm305, %v588, 0
  %v619 = vsel %vm305, %v589, 0
  %v622 = vsel %vm305, %v590, 0
  %v625 = vsel %vm305, %v591, 0
  %v628 = vsel %vm305, %v592, 0
  %v631 = vsel %vm305, %v593, 0
  %633 = vmatprep.subr.mxu0 0.0
  %634 = vmatpush1.msra.mxu0 %v594
  %635 = vmatprep.subr.mxu0 0.0
  %636 = vmatpush1.msra.mxu0 %v595
  %637 = vmatprep.subr.mxu0 0.0
  %638 = vmatpush1.msra.mxu0 %v596
  %639 = vmatprep.subr.mxu0 0.0
  %640 = vmatpush1.msra.mxu0 %v597
  %641 = vmatprep.subr.mxu0 0.0
  %642 = vmatpush1.msra.mxu0 0.0
  %643 = vmatprep.subr.mxu0 0.0
  %644 = vmatpush1.msra.mxu0 0.0
  %645 = vmatprep.subr.mxu0 0.0
  %646 = vmatpush1.msra.mxu0 0.0
  %647 = vmatprep.subr.mxu0 0.0
  %648 = vmatpush1.msra.mxu0 0.0
  %649 = vmatprep.subr.mxu0 0.0
  %650 = vmatpush1.msra.mxu0 0.0
  %651 = vmatprep.subr.mxu0 0.0
  %652 = vmatpush1.msra.mxu0 0.0
  %653 = vmatprep.subr.mxu0 0.0
  %654 = vmatpush1.msra.mxu0 0.0
  %655 = vmatprep.subr.mxu0 0.0
  %656 = vmatpush1.msra.mxu0 0.0
  %657 = vmatprep.subr.mxu0 0.0
  %658 = vmatpush1.msra.mxu0 0.0
  %659 = vmatprep.subr.mxu0 0.0
  %660 = vmatpush1.msra.mxu0 0.0
  %661 = vmatprep.subr.mxu0 0.0
  %662 = vmatpush1.msra.mxu0 0.0
  %663 = vmatprep.subr.mxu0 0.0
  %664 = vmatpush1.msra.mxu0 0.0
  %665 = vmatprep.subr.mxu0 0.0
  %666 = vmatpush1.msra.mxu0 0.0
  %667 = vmatprep.subr.mxu0 0.0
  %668 = vmatpush1.msra.mxu0 0.0
  %669 = vmatprep.subr.mxu0 0.0
  %670 = vmatpush1.msra.mxu0 0.0
  %671 = vmatprep.subr.mxu0 0.0
  %672 = vmatpush1.msra.mxu0 0.0
  %673 = vmatprep.subr.mxu0 0.0
  %674 = vmatpush1.msra.mxu0 0.0
  %675 = vmatprep.subr.mxu0 0.0
  %676 = vmatpush1.msra.mxu0 0.0
  %677 = vmatprep.subr.mxu0 0.0
  %678 = vmatpush1.msra.mxu0 0.0
  %679 = vmatprep.subr.mxu0 0.0
  %680 = vmatpush1.msra.mxu0 0.0
  %681 = vmatprep.subr.mxu0 0.0
  %682 = vmatpush1.msra.mxu0 0.0
  %683 = vmatprep.subr.mxu0 0.0
  %684 = vmatpush1.msra.mxu0 0.0
  %685 = vmatprep.subr.mxu0 0.0
  %686 = vmatpush1.msra.mxu0 0.0
  %687 = vmatprep.subr.mxu0 0.0
  %688 = vmatpush1.msra.mxu0 0.0
  %689 = vmatprep.subr.mxu0 0.0
  %690 = vmatpush1.msra.mxu0 0.0
  %691 = vmatprep.subr.mxu0 0.0
  %692 = vmatpush1.msra.mxu0 0.0
  %693 = vmatprep.subr.mxu0 0.0
  %694 = vmatpush1.msra.mxu0 0.0
  %695 = vmatprep.subr.mxu0 0.0
  %696 = vmatpush1.msra.mxu0 0.0
  %697 = vmatprep.mubr.f32.mxu0 0.0
  %698 = vmatmul.mubr.f32.gmra.mrb[0].mxu0 %v604
  %v699 = vpop.f32.mrb[0].mxu0
  %v700 = vadd.f32 %v602, %v699
  %v701 = vpop.f32.mrb[0].mxu0
  %702 = vmatprep.mubr.f32.mxu0 0.0
  %703 = vmatmul.mubr.f32.gmra.mrb[0].mxu0 %v607
  %v704 = vpop.f32.mrb[0].mxu0
  %v705 = vadd.f32 %v602, %v704
  %v706 = vpop.f32.mrb[0].mxu0
  %707 = vmatprep.mubr.f32.mxu0 0.0
  %708 = vmatmul.mubr.f32.gmra.mrb[0].mxu0 %v610
  %v709 = vpop.f32.mrb[0].mxu0
  %v710 = vadd.f32 %v602, %v709
  %v711 = vpop.f32.mrb[0].mxu0
  %712 = vmatprep.mubr.f32.mxu0 0.0
  %713 = vmatmul.mubr.f32.gmra.mrb[0].mxu0 %v613
  %v714 = vpop.f32.mrb[0].mxu0
  %v715 = vadd.f32 %v602, %v714
  %v716 = vpop.f32.mrb[0].mxu0
  %717 = vmatprep.mubr.f32.mxu0 0.0
  %718 = vmatmul.mubr.f32.gmra.mrb[0].mxu0 %v616
  %v719 = vpop.f32.mrb[0].mxu0
  %v720 = vadd.f32 %v602, %v719
  %v721 = vpop.f32.mrb[0].mxu0
  %722 = vmatprep.mubr.f32.mxu0 0.0
  %723 = vmatmul.mubr.f32.gmra.mrb[0].mxu0 %v619
  %v724 = vpop.f32.mrb[0].mxu0
  %v725 = vadd.f32 %v602, %v724
  %v726 = vpop.f32.mrb[0].mxu0
  %727 = vmatprep.mubr.f32.mxu0 0.0
  %728 = vmatmul.mubr.f32.gmra.mrb[0].mxu0 %v622
  %v729 = vpop.f32.mrb[0].mxu0
  %v730 = vadd.f32 %v602, %v729
  %v731 = vpop.f32.mrb[0].mxu0
  %732 = vmatprep.mubr.f32.mxu0 0.0
  %733 = vmatmul.mubr.f32.gmra.mrb[0].mxu0 %v625
  %v734 = vpop.f32.mrb[0].mxu0
  %v735 = vadd.f32 %v602, %v734
  %v736 = vpop.f32.mrb[0].mxu0
  %737 = vmatprep.mubr.f32.mxu0 0.0
  %738 = vmatmul.mubr.f32.gmra.mrb[0].mxu0 %v628
  %v739 = vpop.f32.mrb[0].mxu0
  %v740 = vadd.f32 %v602, %v739
  %v741 = vpop.f32.mrb[0].mxu0
  %742 = vmatprep.mubr.f32.mxu0 0.0
  %743 = vmatmul.mubr.f32.gmra.mrb[0].mxu0 %v631
  %v744 = vpop.f32.mrb[0].mxu0
  %v745 = vadd.f32 %v602, %v744
  %v746 = vpop.f32.mrb[0].mxu0
  %747 = vdwg.mxu0
  %v748 = vadd.f32 %v194, %v700
  %v749 = vadd.f32 %v199, %v705
  %v750 = vadd.f32 %v204, %v710
  %v751 = vadd.f32 %v209, %v715
  %v752 = vadd.f32 %v214, %v720
  %v753 = vadd.f32 %v219, %v725
  %v754 = vadd.f32 %v224, %v730
  %v755 = vadd.f32 %v229, %v735
  %v756 = vadd.f32 %v234, %v740
  %v757 = vadd.f32 %v239, %v745
  %v758 = vadd.f32 %v700, 0.0
  %v759 = vadd.f32 %v705, 0.0
  %v760 = vadd.f32 %v710, 0.0
  %v761 = vadd.f32 %v715, 0.0
  %v762 = vadd.f32 %v720, 0.0
  %v763 = vadd.f32 %v725, 0.0
  %v764 = vadd.f32 %v730, 0.0
  %v765 = vadd.f32 %v735, 0.0
  %v766 = vadd.f32 %v740, 0.0
  %v767 = vadd.f32 %v745, 0.0
  %v768 = vrot.slane %v748, 6
  %v769 = vrot.slane %v749, 6
  %v770 = vrot.slane %v750, 6
  %v771 = vrot.slane %v751, 6
  %v772 = vrot.slane %v752, 6
  %v773 = vrot.slane %v753, 6
  %v774 = vrot.slane %v754, 6
  %v775 = vrot.slane %v755, 6
  %v776 = vrot.slane %v756, 6
  %v777 = vrot.slane %v757, 6
  %vm778 = vcmp.lt.s32.totalorder %v253, 2
  %v779 = vsel %vm778, %v776, %v777
  %v780 = vsel %vm778, %v775, %v776
  %v781 = vsel %vm778, %v774, %v775
  %v782 = vsel %vm778, %v773, %v774
  %v783 = vsel %vm778, %v772, %v773
  %v784 = vsel %vm778, %v771, %v772
  %v785 = vsel %vm778, %v770, %v771
  %v786 = vsel %vm778, %v769, %v770
  %v787 = vsel %vm778, %v768, %v769
  %v788 = vsel %vm778, %v777, %v768
  %799 = vrot.lane.b32.xlu0 %v748, 32
  %v800 = vpop.permute.xlu0 %799
  %801 = vrot.lane.b32.xlu0 %v749, 32
  %v802 = vpop.permute.xlu0 %801
  %803 = vrot.lane.b32.xlu0 %v750, 32
  %v804 = vpop.permute.xlu0 %803
  %805 = vrot.lane.b32.xlu0 %v751, 32
  %v806 = vpop.permute.xlu0 %805
  %807 = vrot.lane.b32.xlu0 %v752, 32
  %v808 = vpop.permute.xlu0 %807
  %809 = vrot.lane.b32.xlu0 %v753, 32
  %v810 = vpop.permute.xlu0 %809
  %811 = vrot.lane.b32.xlu0 %v754, 32
  %v812 = vpop.permute.xlu0 %811
  %813 = vrot.lane.b32.xlu0 %v755, 32
  %v814 = vpop.permute.xlu0 %813
  %815 = vrot.lane.b32.xlu0 %v756, 32
  %v816 = vpop.permute.xlu0 %815
  %817 = vrot.lane.b32.xlu0 %v757, 32
  %v818 = vpop.permute.xlu0 %817
  %v829 = vsel %vm305, %v788, %v800
  %v830 = vsel %vm305, %v787, %v802
  %v831 = vsel %vm305, %v786, %v804
  %v832 = vsel %vm305, %v785, %v806
  %v833 = vsel %vm305, %v784, %v808
  %v834 = vsel %vm305, %v783, %v810
  %v835 = vsel %vm305, %v782, %v812
  %v836 = vsel %vm305, %v781, %v814
  %v837 = vsel %vm305, %v780, %v816
  %v838 = vsel %vm305, %v779, %v818
  %v839 = vld [vmem:[%s1 + $0x80] sm:$0xff]
  %v840 = vld [vmem:[%s1 + $0x88] sm:$0xff]
  %v841 = vld [vmem:[%s1 + $0x90] sm:$0xff]
  %v842 = vld [vmem:[%s1 + $0x98] sm:$0xff]
  %v843 = vld [vmem:[%s1 + $0xa0] sm:$0xff]
  %v844 = vld [vmem:[%s1 + $0xa8] sm:$0xff]
  %v845 = vld [vmem:[%s1 + $0xb0] sm:$0xff]
  %v846 = vld [vmem:[%s1 + $0xb8] sm:$0xff]
  %v847 = vld [vmem:[%s1 + $0x202] sm:$0x1]
  %v848 = vlaneseq
  %v849 = vshrl.u32 %v848, 7
  %v850 = vsub.s32 0, %v849
  %v851 = vrot.slane %v847, %v850
  %v853 = vsel %vm96, %v829, 0
  %v856 = vsel %vm96, %v830, 0
  %v859 = vsel %vm96, %v831, 0
  %v862 = vsel %vm96, %v832, 0
  %v865 = vsel %vm96, %v833, 0
  %v868 = vsel %vm96, %v834, 0
  %v871 = vsel %vm96, %v835, 0
  %v874 = vsel %vm96, %v836, 0
  %v877 = vsel %vm96, %v837, 0
  %v880 = vsel %vm96, %v838, 0
  %882 = vmatprep.subr.mxu0 0.0
  %883 = vmatpush1.msra.mxu0 %v839
  %884 = vmatprep.subr.mxu0 0.0
  %885 = vmatpush1.msra.mxu0 %v840
  %886 = vmatprep.subr.mxu0 0.0
  %887 = vmatpush1.msra.mxu0 %v841
  %888 = vmatprep.subr.mxu0 0.0
  %889 = vmatpush1.msra.mxu0 %v842
  %890 = vmatprep.subr.mxu0 0.0
  %891 = vmatpush1.msra.mxu0 %v843
  %892 = vmatprep.subr.mxu0 0.0
  %893 = vmatpush1.msra.mxu0 %v844
  %894 = vmatprep.subr.mxu0 0.0
  %895 = vmatpush1.msra.mxu0 %v845
  %896 = vmatprep.subr.mxu0 0.0
  %897 = vmatpush1.msra.mxu0 %v846
  %898 = vmatprep.subr.mxu0 0.0
  %899 = vmatpush1.msra.mxu0 0.0
  %900 = vmatprep.subr.mxu0 0.0
  %901 = vmatpush1.msra.mxu0 0.0
  %902 = vmatprep.subr.mxu0 0.0
  %903 = vmatpush1.msra.mxu0 0.0
  %904 = vmatprep.subr.mxu0 0.0
  %905 = vmatpush1.msra.mxu0 0.0
  %906 = vmatprep.subr.mxu0 0.0
  %907 = vmatpush1.msra.mxu0 0.0
  %908 = vmatprep.subr.mxu0 0.0
  %909 = vmatpush1.msra.mxu0 0.0
  %910 = vmatprep.subr.mxu0 0.0
  %911 = vmatpush1.msra.mxu0 0.0
  %912 = vmatprep.subr.mxu0 0.0
  %913 = vmatpush1.msra.mxu0 0.0
  %914 = vmatprep.subr.mxu0 0.0
  %915 = vmatpush1.msra.mxu0 0.0
  %916 = vmatprep.subr.mxu0 0.0
  %917 = vmatpush1.msra.mxu0 0.0
  %918 = vmatprep.subr.mxu0 0.0
  %919 = vmatpush1.msra.mxu0 0.0
  %920 = vmatprep.subr.mxu0 0.0
  %921 = vmatpush1.msra.mxu0 0.0
  %922 = vmatprep.subr.mxu0 0.0
  %923 = vmatpush1.msra.mxu0 0.0
  %924 = vmatprep.subr.mxu0 0.0
  %925 = vmatpush1.msra.mxu0 0.0
  %926 = vmatprep.subr.mxu0 0.0
  %927 = vmatpush1.msra.mxu0 0.0
  %928 = vmatprep.subr.mxu0 0.0
  %929 = vmatpush1.msra.mxu0 0.0
  %930 = vmatprep.subr.mxu0 0.0
  %931 = vmatpush1.msra.mxu0 0.0
  %932 = vmatprep.subr.mxu0 0.0
  %933 = vmatpush1.msra.mxu0 0.0
  %934 = vmatprep.subr.mxu0 0.0
  %935 = vmatpush1.msra.mxu0 0.0
  %936 = vmatprep.subr.mxu0 0.0
  %937 = vmatpush1.msra.mxu0 0.0
  %938 = vmatprep.subr.mxu0 0.0
  %939 = vmatpush1.msra.mxu0 0.0
  %940 = vmatprep.subr.mxu0 0.0
  %941 = vmatpush1.msra.mxu0 0.0
  %942 = vmatprep.subr.mxu0 0.0
  %943 = vmatpush1.msra.mxu0 0.0
  %944 = vmatprep.subr.mxu0 0.0
  %945 = vmatpush1.msra.mxu0 0.0
  %946 = vmatprep.mubr.f32.mxu0 0.0
  %947 = vmatmul.mubr.f32.gmra.mrb[0].mxu0 %v853
  %v948 = vpop.f32.mrb[0].mxu0
  %v949 = vadd.f32 %v851, %v948
  %v950 = vpop.f32.mrb[0].mxu0
  %951 = vmatprep.mubr.f32.mxu0 0.0
  %952 = vmatmul.mubr.f32.gmra.mrb[0].mxu0 %v856
  %v953 = vpop.f32.mrb[0].mxu0
  %v954 = vadd.f32 %v851, %v953
  %v955 = vpop.f32.mrb[0].mxu0
  %956 = vmatprep.mubr.f32.mxu0 0.0
  %957 = vmatmul.mubr.f32.gmra.mrb[0].mxu0 %v859
  %v958 = vpop.f32.mrb[0].mxu0
  %v959 = vadd.f32 %v851, %v958
  %v960 = vpop.f32.mrb[0].mxu0
  %961 = vmatprep.mubr.f32.mxu0 0.0
  %962 = vmatmul.mubr.f32.gmra.mrb[0].mxu0 %v862
  %v963 = vpop.f32.mrb[0].mxu0
  %v964 = vadd.f32 %v851, %v963
  %v965 = vpop.f32.mrb[0].mxu0
  %966 = vmatprep.mubr.f32.mxu0 0.0
  %967 = vmatmul.mubr.f32.gmra.mrb[0].mxu0 %v865
  %v968 = vpop.f32.mrb[0].mxu0
  %v969 = vadd.f32 %v851, %v968
  %v970 = vpop.f32.mrb[0].mxu0
  %971 = vmatprep.mubr.f32.mxu0 0.0
  %972 = vmatmul.mubr.f32.gmra.mrb[0].mxu0 %v868
  %v973 = vpop.f32.mrb[0].mxu0
  %v974 = vadd.f32 %v851, %v973
  %v975 = vpop.f32.mrb[0].mxu0
  %976 = vmatprep.mubr.f32.mxu0 0.0
  %977 = vmatmul.mubr.f32.gmra.mrb[0].mxu0 %v871
  %v978 = vpop.f32.mrb[0].mxu0
  %v979 = vadd.f32 %v851, %v978
  %v980 = vpop.f32.mrb[0].mxu0
  %981 = vmatprep.mubr.f32.mxu0 0.0
  %982 = vmatmul.mubr.f32.gmra.mrb[0].mxu0 %v874
  %v983 = vpop.f32.mrb[0].mxu0
  %v984 = vadd.f32 %v851, %v983
  %v985 = vpop.f32.mrb[0].mxu0
  %986 = vmatprep.mubr.f32.mxu0 0.0
  %987 = vmatmul.mubr.f32.gmra.mrb[0].mxu0 %v877
  %v988 = vpop.f32.mrb[0].mxu0
  %v989 = vadd.f32 %v851, %v988
  %v990 = vpop.f32.mrb[0].mxu0
  %991 = vmatprep.mubr.f32.mxu0 0.0
  %992 = vmatmul.mubr.f32.gmra.mrb[0].mxu0 %v880
  %v993 = vpop.f32.mrb[0].mxu0
  %v994 = vadd.f32 %v851, %v993
  %v995 = vpop.f32.mrb[0].mxu0
  %996 = vdwg.mxu0
  %v997 = vtanh.pop %v949
  %v998 = vtanh.pop %v954
  %v999 = vtanh.pop %v959
  %v1000 = vtanh.pop %v964
  %v1001 = vtanh.pop %v969
  %v1002 = vtanh.pop %v974
  %v1003 = vtanh.pop %v979
  %v1004 = vtanh.pop %v984
  %v1005 = vtanh.pop %v989
  %v1006 = vtanh.pop %v994
  %v1007 = vxor.u32 %v949, 2147483648
  %v1008 = vxor.u32 %v954, 2147483648
  %v1009 = vxor.u32 %v959, 2147483648
  %v1010 = vxor.u32 %v964, 2147483648
  %v1011 = vxor.u32 %v969, 2147483648
  %v1012 = vxor.u32 %v974, 2147483648
  %v1013 = vxor.u32 %v979, 2147483648
  %v1014 = vxor.u32 %v984, 2147483648
  %v1015 = vxor.u32 %v989, 2147483648
  %v1016 = vxor.u32 %v994, 2147483648
  %v1017 = vmul.f32 %v1007, 1.442695
  %v1018 = vpow.pop %v1017
  %v1019 = vmul.f32 %v1008, 1.442695
  %v1020 = vpow.pop %v1019
  %v1021 = vmul.f32 %v1009, 1.442695
  %v1022 = vpow.pop %v1021
  %v1023 = vmul.f32 %v1010, 1.442695
  %v1024 = vpow.pop %v1023
  %v1025 = vmul.f32 %v1011, 1.442695
  %v1026 = vpow.pop %v1025
  %v1027 = vmul.f32 %v1012, 1.442695
  %v1028 = vpow.pop %v1027
  %v1029 = vmul.f32 %v1013, 1.442695
  %v1030 = vpow.pop %v1029
  %v1031 = vmul.f32 %v1014, 1.442695
  %v1032 = vpow.pop %v1031
  %v1033 = vmul.f32 %v1015, 1.442695
  %v1034 = vpow.pop %v1033
  %v1035 = vmul.f32 %v1016, 1.442695
  %v1036 = vpow.pop %v1035
  %v1037 = vadd.f32 %v1018, 1.0
  %v1038 = vadd.f32 %v1020, 1.0
  %v1039 = vadd.f32 %v1022, 1.0
  %v1040 = vadd.f32 %v1024, 1.0
  %v1041 = vadd.f32 %v1026, 1.0
  %v1042 = vadd.f32 %v1028, 1.0
  %v1043 = vadd.f32 %v1030, 1.0
  %v1044 = vadd.f32 %v1032, 1.0
  %v1045 = vadd.f32 %v1034, 1.0
  %v1046 = vadd.f32 %v1036, 1.0
  %v1047 = vrcp.pop %v1037
  %v1048 = vmul.f32 1.0, %v1047
  %v1049 = vrcp.pop %v1038
  %v1050 = vmul.f32 1.0, %v1049
  %v1051 = vrcp.pop %v1039
  %v1052 = vmul.f32 1.0, %v1051
  %v1053 = vrcp.pop %v1040
  %v1054 = vmul.f32 1.0, %v1053
  %v1055 = vrcp.pop %v1041
  %v1056 = vmul.f32 1.0, %v1055
  %v1057 = vrcp.pop %v1042
  %v1058 = vmul.f32 1.0, %v1057
  %v1059 = vrcp.pop %v1043
  %v1060 = vmul.f32 1.0, %v1059
  %v1061 = vrcp.pop %v1044
  %v1062 = vmul.f32 1.0, %v1061
  %v1063 = vrcp.pop %v1045
  %v1064 = vmul.f32 1.0, %v1063
  %v1065 = vrcp.pop %v1046
  %v1066 = vmul.f32 1.0, %v1065
  %1077 = vrot.lane.b32.xlu0 %v1048, 96
  %v1078 = vpop.permute.xlu0 %1077
  %1079 = vrot.lane.b32.xlu0 %v1050, 96
  %v1080 = vpop.permute.xlu0 %1079
  %1081 = vrot.lane.b32.xlu0 %v1052, 96
  %v1082 = vpop.permute.xlu0 %1081
  %1083 = vrot.lane.b32.xlu0 %v1054, 96
  %v1084 = vpop.permute.xlu0 %1083
  %1085 = vrot.lane.b32.xlu0 %v1056, 96
  %v1086 = vpop.permute.xlu0 %1085
  %1087 = vrot.lane.b32.xlu0 %v1058, 96
  %v1088 = vpop.permute.xlu0 %1087
  %1089 = vrot.lane.b32.xlu0 %v1060, 96
  %v1090 = vpop.permute.xlu0 %1089
  %1091 = vrot.lane.b32.xlu0 %v1062, 96
  %v1092 = vpop.permute.xlu0 %1091
  %1093 = vrot.lane.b32.xlu0 %v1064, 96
  %v1094 = vpop.permute.xlu0 %1093
  %1095 = vrot.lane.b32.xlu0 %v1066, 96
  %v1096 = vpop.permute.xlu0 %1095
  %v1107 = vmul.f32 %v997, %v1078
  %v1108 = vmul.f32 %v998, %v1080
  %v1109 = vmul.f32 %v999, %v1082
  %v1110 = vmul.f32 %v1000, %v1084
  %v1111 = vmul.f32 %v1001, %v1086
  %v1112 = vmul.f32 %v1002, %v1088
  %v1113 = vmul.f32 %v1003, %v1090
  %v1114 = vmul.f32 %v1004, %v1092
  %v1115 = vmul.f32 %v1005, %v1094
  %v1116 = vmul.f32 %v1006, %v1096
  %v1117 = vld [vmem:[%s1 + $0x160] sm:$0xff]
  %v1118 = vld [vmem:[%s1 + $0x168] sm:$0xff]
  %v1119 = vld [vmem:[%s1 + $0x170] sm:$0xff]
  %v1120 = vld [vmem:[%s1 + $0x178] sm:$0xff]
  %v1121 = vld [vmem:[%s1 + $0x206] sm:$0x1]
  %v1122 = vlaneseq
  %v1123 = vshrl.u32 %v1122, 7
  %v1124 = vsub.s32 0, %v1123
  %v1125 = vrot.slane %v1121, %v1124
  %v1127 = vsel %vm305, %v1107, 0
  %v1130 = vsel %vm305, %v1108, 0
  %v1133 = vsel %vm305, %v1109, 0
  %v1136 = vsel %vm305, %v1110, 0
  %v1139 = vsel %vm305, %v1111, 0
  %v1142 = vsel %vm305, %v1112, 0
  %v1145 = vsel %vm305, %v1113, 0
  %v1148 = vsel %vm305, %v1114, 0
  %v1151 = vsel %vm305, %v1115, 0
  %v1154 = vsel %vm305, %v1116, 0
  %1156 = vmatprep.subr.mxu0 0.0
  %1157 = vmatpush1.msra.mxu0 %v1117
  %1158 = vmatprep.subr.mxu0 0.0
  %1159 = vmatpush1.msra.mxu0 %v1118
  %1160 = vmatprep.subr.mxu0 0.0
  %1161 = vmatpush1.msra.mxu0 %v1119
  %1162 = vmatprep.subr.mxu0 0.0
  %1163 = vmatpush1.msra.mxu0 %v1120
  %1164 = vmatprep.subr.mxu0 0.0
  %1165 = vmatpush1.msra.mxu0 0.0
  %1166 = vmatprep.subr.mxu0 0.0
  %1167 = vmatpush1.msra.mxu0 0.0
  %1168 = vmatprep.subr.mxu0 0.0
  %1169 = vmatpush1.msra.mxu0 0.0
  %1170 = vmatprep.subr.mxu0 0.0
  %1171 = vmatpush1.msra.mxu0 0.0
  %1172 = vmatprep.subr.mxu0 0.0
  %1173 = vmatpush1.msra.mxu0 0.0
  %1174 = vmatprep.subr.mxu0 0.0
  %1175 = vmatpush1.msra.mxu0 0.0
  %1176 = vmatprep.subr.mxu0 0.0
  %1177 = vmatpush1.msra.mxu0 0.0
  %1178 = vmatprep.subr.mxu0 0.0
  %1179 = vmatpush1.msra.mxu0 0.0
  %1180 = vmatprep.subr.mxu0 0.0
  %1181 = vmatpush1.msra.mxu0 0.0
  %1182 = vmatprep.subr.mxu0 0.0
  %1183 = vmatpush1.msra.mxu0 0.0
  %1184 = vmatprep.subr.mxu0 0.0
  %1185 = vmatpush1.msra.mxu0 0.0
  %1186 = vmatprep.subr.mxu0 0.0
  %1187 = vmatpush1.msra.mxu0 0.0
  %1188 = vmatprep.subr.mxu0 0.0
  %1189 = vmatpush1.msra.mxu0 0.0
  %1190 = vmatprep.subr.mxu0 0.0
  %1191 = vmatpush1.msra.mxu0 0.0
  %1192 = vmatprep.subr.mxu0 0.0
  %1193 = vmatpush1.msra.mxu0 0.0
  %1194 = vmatprep.subr.mxu0 0.0
  %1195 = vmatpush1.msra.mxu0 0.0
  %1196 = vmatprep.subr.mxu0 0.0
  %1197 = vmatpush1.msra.mxu0 0.0
  %1198 = vmatprep.subr.mxu0 0.0
  %1199 = vmatpush1.msra.mxu0 0.0
  %1200 = vmatprep.subr.mxu0 0.0
  %1201 = vmatpush1.msra.mxu0 0.0
  %1202 = vmatprep.subr.mxu0 0.0
  %1203 = vmatpush1.msra.mxu0 0.0
  %1204 = vmatprep.subr.mxu0 0.0
  %1205 = vmatpush1.msra.mxu0 0.0
  %1206 = vmatprep.subr.mxu0 0.0
  %1207 = vmatpush1.msra.mxu0 0.0
  %1208 = vmatprep.subr.mxu0 0.0
  %1209 = vmatpush1.msra.mxu0 0.0
  %1210 = vmatprep.subr.mxu0 0.0
  %1211 = vmatpush1.msra.mxu0 0.0
  %1212 = vmatprep.subr.mxu0 0.0
  %1213 = vmatpush1.msra.mxu0 0.0
  %1214 = vmatprep.subr.mxu0 0.0
  %1215 = vmatpush1.msra.mxu0 0.0
  %1216 = vmatprep.subr.mxu0 0.0
  %1217 = vmatpush1.msra.mxu0 0.0
  %1218 = vmatprep.subr.mxu0 0.0
  %1219 = vmatpush1.msra.mxu0 0.0
  %1220 = vmatprep.mubr.f32.mxu0 0.0
  %1221 = vmatmul.mubr.f32.gmra.mrb[0].mxu0 %v1127
  %v1222 = vpop.f32.mrb[0].mxu0
  %v1223 = vadd.f32 %v1125, %v1222
  %v1224 = vpop.f32.mrb[0].mxu0
  %1225 = vmatprep.mubr.f32.mxu0 0.0
  %1226 = vmatmul.mubr.f32.gmra.mrb[0].mxu0 %v1130
  %v1227 = vpop.f32.mrb[0].mxu0
  %v1228 = vadd.f32 %v1125, %v1227
  %v1229 = vpop.f32.mrb[0].mxu0
  %1230 = vmatprep.mubr.f32.mxu0 0.0
  %1231 = vmatmul.mubr.f32.gmra.mrb[0].mxu0 %v1133
  %v1232 = vpop.f32.mrb[0].mxu0
  %v1233 = vadd.f32 %v1125, %v1232
  %v1234 = vpop.f32.mrb[0].mxu0
  %1235 = vmatprep.mubr.f32.mxu0 0.0
  %1236 = vmatmul.mubr.f32.gmra.mrb[0].mxu0 %v1136
  %v1237 = vpop.f32.mrb[0].mxu0
  %v1238 = vadd.f32 %v1125, %v1237
  %v1239 = vpop.f32.mrb[0].mxu0
  %1240 = vmatprep.mubr.f32.mxu0 0.0
  %1241 = vmatmul.mubr.f32.gmra.mrb[0].mxu0 %v1139
  %v1242 = vpop.f32.mrb[0].mxu0
  %v1243 = vadd.f32 %v1125, %v1242
  %v1244 = vpop.f32.mrb[0].mxu0
  %1245 = vmatprep.mubr.f32.mxu0 0.0
  %1246 = vmatmul.mubr.f32.gmra.mrb[0].mxu0 %v1142
  %v1247 = vpop.f32.mrb[0].mxu0
  %v1248 = vadd.f32 %v1125, %v1247
  %v1249 = vpop.f32.mrb[0].mxu0
  %1250 = vmatprep.mubr.f32.mxu0 0.0
  %1251 = vmatmul.mubr.f32.gmra.mrb[0].mxu0 %v1145
  %v1252 = vpop.f32.mrb[0].mxu0
  %v1253 = vadd.f32 %v1125, %v1252
  %v1254 = vpop.f32.mrb[0].mxu0
  %1255 = vmatprep.mubr.f32.mxu0 0.0
  %1256 = vmatmul.mubr.f32.gmra.mrb[0].mxu0 %v1148
  %v1257 = vpop.f32.mrb[0].mxu0
  %v1258 = vadd.f32 %v1125, %v1257
  %v1259 = vpop.f32.mrb[0].mxu0
  %1260 = vmatprep.mubr.f32.mxu0 0.0
  %1261 = vmatmul.mubr.f32.gmra.mrb[0].mxu0 %v1151
  %v1262 = vpop.f32.mrb[0].mxu0
  %v1263 = vadd.f32 %v1125, %v1262
  %v1264 = vpop.f32.mrb[0].mxu0
  %1265 = vmatprep.mubr.f32.mxu0 0.0
  %1266 = vmatmul.mubr.f32.gmra.mrb[0].mxu0 %v1154
  %v1267 = vpop.f32.mrb[0].mxu0
  %v1268 = vadd.f32 %v1125, %v1267
  %v1269 = vpop.f32.mrb[0].mxu0
  %1270 = vdwg.mxu0
  %v1271 = vadd.f32 %v748, %v1223
  %v1272 = vadd.f32 %v749, %v1228
  %v1273 = vadd.f32 %v750, %v1233
  %v1274 = vadd.f32 %v751, %v1238
  %v1275 = vadd.f32 %v752, %v1243
  %v1276 = vadd.f32 %v753, %v1248
  %v1277 = vadd.f32 %v754, %v1253
  %v1278 = vadd.f32 %v755, %v1258
  %v1279 = vadd.f32 %v756, %v1263
  %v1280 = vadd.f32 %v757, %v1268
  %v1281 = vadd.f32 %v758, %v1223
  %v1282 = vadd.f32 %v759, %v1228
  %v1283 = vadd.f32 %v760, %v1233
  %v1284 = vadd.f32 %v761, %v1238
  %v1285 = vadd.f32 %v762, %v1243
  %v1286 = vadd.f32 %v763, %v1248
  %v1287 = vadd.f32 %v764, %v1253
  %v1288 = vadd.f32 %v765, %v1258
  %v1289 = vadd.f32 %v766, %v1263
  %v1290 = vadd.f32 %v767, %v1268
  %v1291 = vrot.slane %v1271, 4
  %v1292 = vrot.slane %v1272, 4
  %v1293 = vrot.slane %v1273, 4
  %v1294 = vrot.slane %v1274, 4
  %v1295 = vrot.slane %v1275, 4
  %v1296 = vrot.slane %v1276, 4
  %v1297 = vrot.slane %v1277, 4
  %v1298 = vrot.slane %v1278, 4
  %v1299 = vrot.slane %v1279, 4
  %v1300 = vrot.slane %v1280, 4
  %vm1301 = vcmp.lt.s32.totalorder %v253, 4
  %v1302 = vsel %vm1301, %v1299, %v1300
  %v1303 = vsel %vm1301, %v1298, %v1299
  %v1304 = vsel %vm1301, %v1297, %v1298
  %v1305 = vsel %vm1301, %v1296, %v1297
  %v1306 = vsel %vm1301, %v1295, %v1296
  %v1307 = vsel %vm1301, %v1294, %v1295
  %v1308 = vsel %vm1301, %v1293, %v1294
  %v1309 = vsel %vm1301, %v1292, %v1293
  %v1310 = vsel %vm1301, %v1291, %v1292
  %v1311 = vsel %vm1301, %v1300, %v1291
  %1322 = vrot.lane.b32.xlu0 %v1271, 32
  %v1323 = vpop.permute.xlu0 %1322
  %1324 = vrot.lane.b32.xlu0 %v1272, 32
  %v1325 = vpop.permute.xlu0 %1324
  %1326 = vrot.lane.b32.xlu0 %v1273, 32
  %v1327 = vpop.permute.xlu0 %1326
  %1328 = vrot.lane.b32.xlu0 %v1274, 32
  %v1329 = vpop.permute.xlu0 %1328
  %1330 = vrot.lane.b32.xlu0 %v1275, 32
  %v1331 = vpop.permute.xlu0 %1330
  %1332 = vrot.lane.b32.xlu0 %v1276, 32
  %v1333 = vpop.permute.xlu0 %1332
  %1334 = vrot.lane.b32.xlu0 %v1277, 32
  %v1335 = vpop.permute.xlu0 %1334
  %1336 = vrot.lane.b32.xlu0 %v1278, 32
  %v1337 = vpop.permute.xlu0 %1336
  %1338 = vrot.lane.b32.xlu0 %v1279, 32
  %v1339 = vpop.permute.xlu0 %1338
  %1340 = vrot.lane.b32.xlu0 %v1280, 32
  %v1341 = vpop.permute.xlu0 %1340
  %v1352 = vsel %vm305, %v1311, %v1323
  %v1353 = vsel %vm305, %v1310, %v1325
  %v1354 = vsel %vm305, %v1309, %v1327
  %v1355 = vsel %vm305, %v1308, %v1329
  %v1356 = vsel %vm305, %v1307, %v1331
  %v1357 = vsel %vm305, %v1306, %v1333
  %v1358 = vsel %vm305, %v1305, %v1335
  %v1359 = vsel %vm305, %v1304, %v1337
  %v1360 = vsel %vm305, %v1303, %v1339
  %v1361 = vsel %vm305, %v1302, %v1341
  %v1362 = vld [vmem:[%s1 + $0xc0] sm:$0xff]
  %v1363 = vld [vmem:[%s1 + $0xc8] sm:$0xff]
  %v1364 = vld [vmem:[%s1 + $0xd0] sm:$0xff]
  %v1365 = vld [vmem:[%s1 + $0xd8] sm:$0xff]
  %v1366 = vld [vmem:[%s1 + $0xe0] sm:$0xff]
  %v1367 = vld [vmem:[%s1 + $0xe8] sm:$0xff]
  %v1368 = vld [vmem:[%s1 + $0xf0] sm:$0xff]
  %v1369 = vld [vmem:[%s1 + $0xf8] sm:$0xff]
  %v1370 = vld [vmem:[%s1 + $0x203] sm:$0x1]
  %v1371 = vlaneseq
  %v1372 = vshrl.u32 %v1371, 7
  %v1373 = vsub.s32 0, %v1372
  %v1374 = vrot.slane %v1370, %v1373
  %v1376 = vsel %vm96, %v1352, 0
  %v1379 = vsel %vm96, %v1353, 0
  %v1382 = vsel %vm96, %v1354, 0
  %v1385 = vsel %vm96, %v1355, 0
  %v1388 = vsel %vm96, %v1356, 0
  %v1391 = vsel %vm96, %v1357, 0
  %v1394 = vsel %vm96, %v1358, 0
  %v1397 = vsel %vm96, %v1359, 0
  %v1400 = vsel %vm96, %v1360, 0
  %v1403 = vsel %vm96, %v1361, 0
  %1405 = vmatprep.subr.mxu0 0.0
  %1406 = vmatpush1.msra.mxu0 %v1362
  %1407 = vmatprep.subr.mxu0 0.0
  %1408 = vmatpush1.msra.mxu0 %v1363
  %1409 = vmatprep.subr.mxu0 0.0
  %1410 = vmatpush1.msra.mxu0 %v1364
  %1411 = vmatprep.subr.mxu0 0.0
  %1412 = vmatpush1.msra.mxu0 %v1365
  %1413 = vmatprep.subr.mxu0 0.0
  %1414 = vmatpush1.msra.mxu0 %v1366
  %1415 = vmatprep.subr.mxu0 0.0
  %1416 = vmatpush1.msra.mxu0 %v1367
  %1417 = vmatprep.subr.mxu0 0.0
  %1418 = vmatpush1.msra.mxu0 %v1368
  %1419 = vmatprep.subr.mxu0 0.0
  %1420 = vmatpush1.msra.mxu0 %v1369
  %1421 = vmatprep.subr.mxu0 0.0
  %1422 = vmatpush1.msra.mxu0 0.0
  %1423 = vmatprep.subr.mxu0 0.0
  %1424 = vmatpush1.msra.mxu0 0.0
  %1425 = vmatprep.subr.mxu0 0.0
  %1426 = vmatpush1.msra.mxu0 0.0
  %1427 = vmatprep.subr.mxu0 0.0
  %1428 = vmatpush1.msra.mxu0 0.0
  %1429 = vmatprep.subr.mxu0 0.0
  %1430 = vmatpush1.msra.mxu0 0.0
  %1431 = vmatprep.subr.mxu0 0.0
  %1432 = vmatpush1.msra.mxu0 0.0
  %1433 = vmatprep.subr.mxu0 0.0
  %1434 = vmatpush1.msra.mxu0 0.0
  %1435 = vmatprep.subr.mxu0 0.0
  %1436 = vmatpush1.msra.mxu0 0.0
  %1437 = vmatprep.subr.mxu0 0.0
  %1438 = vmatpush1.msra.mxu0 0.0
  %1439 = vmatprep.subr.mxu0 0.0
  %1440 = vmatpush1.msra.mxu0 0.0
  %1441 = vmatprep.subr.mxu0 0.0
  %1442 = vmatpush1.msra.mxu0 0.0
  %1443 = vmatprep.subr.mxu0 0.0
  %1444 = vmatpush1.msra.mxu0 0.0
  %1445 = vmatprep.subr.mxu0 0.0
  %1446 = vmatpush1.msra.mxu0 0.0
  %1447 = vmatprep.subr.mxu0 0.0
  %1448 = vmatpush1.msra.mxu0 0.0
  %1449 = vmatprep.subr.mxu0 0.0
  %1450 = vmatpush1.msra.mxu0 0.0
  %1451 = vmatprep.subr.mxu0 0.0
  %1452 = vmatpush1.msra.mxu0 0.0
  %1453 = vmatprep.subr.mxu0 0.0
  %1454 = vmatpush1.msra.mxu0 0.0
  %1455 = vmatprep.subr.mxu0 0.0
  %1456 = vmatpush1.msra.mxu0 0.0
  %1457 = vmatprep.subr.mxu0 0.0
  %1458 = vmatpush1.msra.mxu0 0.0
  %1459 = vmatprep.subr.mxu0 0.0
  %1460 = vmatpush1.msra.mxu0 0.0
  %1461 = vmatprep.subr.mxu0 0.0
  %1462 = vmatpush1.msra.mxu0 0.0
  %1463 = vmatprep.subr.mxu0 0.0
  %1464 = vmatpush1.msra.mxu0 0.0
  %1465 = vmatprep.subr.mxu0 0.0
  %1466 = vmatpush1.msra.mxu0 0.0
  %1467 = vmatprep.subr.mxu0 0.0
  %1468 = vmatpush1.msra.mxu0 0.0
  %1469 = vmatprep.mubr.f32.mxu0 0.0
  %1470 = vmatmul.mubr.f32.gmra.mrb[0].mxu0 %v1376
  %v1471 = vpop.f32.mrb[0].mxu0
  %v1472 = vadd.f32 %v1374, %v1471
  %v1473 = vpop.f32.mrb[0].mxu0
  %1474 = vmatprep.mubr.f32.mxu0 0.0
  %1475 = vmatmul.mubr.f32.gmra.mrb[0].mxu0 %v1379
  %v1476 = vpop.f32.mrb[0].mxu0
  %v1477 = vadd.f32 %v1374, %v1476
  %v1478 = vpop.f32.mrb[0].mxu0
  %1479 = vmatprep.mubr.f32.mxu0 0.0
  %1480 = vmatmul.mubr.f32.gmra.mrb[0].mxu0 %v1382
  %v1481 = vpop.f32.mrb[0].mxu0
  %v1482 = vadd.f32 %v1374, %v1481
  %v1483 = vpop.f32.mrb[0].mxu0
  %1484 = vmatprep.mubr.f32.mxu0 0.0
  %1485 = vmatmul.mubr.f32.gmra.mrb[0].mxu0 %v1385
  %v1486 = vpop.f32.mrb[0].mxu0
  %v1487 = vadd.f32 %v1374, %v1486
  %v1488 = vpop.f32.mrb[0].mxu0
  %1489 = vmatprep.mubr.f32.mxu0 0.0
  %1490 = vmatmul.mubr.f32.gmra.mrb[0].mxu0 %v1388
  %v1491 = vpop.f32.mrb[0].mxu0
  %v1492 = vadd.f32 %v1374, %v1491
  %v1493 = vpop.f32.mrb[0].mxu0
  %1494 = vmatprep.mubr.f32.mxu0 0.0
  %1495 = vmatmul.mubr.f32.gmra.mrb[0].mxu0 %v1391
  %v1496 = vpop.f32.mrb[0].mxu0
  %v1497 = vadd.f32 %v1374, %v1496
  %v1498 = vpop.f32.mrb[0].mxu0
  %1499 = vmatprep.mubr.f32.mxu0 0.0
  %1500 = vmatmul.mubr.f32.gmra.mrb[0].mxu0 %v1394
  %v1501 = vpop.f32.mrb[0].mxu0
  %v1502 = vadd.f32 %v1374, %v1501
  %v1503 = vpop.f32.mrb[0].mxu0
  %1504 = vmatprep.mubr.f32.mxu0 0.0
  %1505 = vmatmul.mubr.f32.gmra.mrb[0].mxu0 %v1397
  %v1506 = vpop.f32.mrb[0].mxu0
  %v1507 = vadd.f32 %v1374, %v1506
  %v1508 = vpop.f32.mrb[0].mxu0
  %1509 = vmatprep.mubr.f32.mxu0 0.0
  %1510 = vmatmul.mubr.f32.gmra.mrb[0].mxu0 %v1400
  %v1511 = vpop.f32.mrb[0].mxu0
  %v1512 = vadd.f32 %v1374, %v1511
  %v1513 = vpop.f32.mrb[0].mxu0
  %1514 = vmatprep.mubr.f32.mxu0 0.0
  %1515 = vmatmul.mubr.f32.gmra.mrb[0].mxu0 %v1403
  %v1516 = vpop.f32.mrb[0].mxu0
  %v1517 = vadd.f32 %v1374, %v1516
  %v1518 = vpop.f32.mrb[0].mxu0
  %1519 = vdwg.mxu0
  %v1520 = vtanh.pop %v1472
  %v1521 = vtanh.pop %v1477
  %v1522 = vtanh.pop %v1482
  %v1523 = vtanh.pop %v1487
  %v1524 = vtanh.pop %v1492
  %v1525 = vtanh.pop %v1497
  %v1526 = vtanh.pop %v1502
  %v1527 = vtanh.pop %v1507
  %v1528 = vtanh.pop %v1512
  %v1529 = vtanh.pop %v1517
  %v1530 = vxor.u32 %v1472, 2147483648
  %v1531 = vxor.u32 %v1477, 2147483648
  %v1532 = vxor.u32 %v1482, 2147483648
  %v1533 = vxor.u32 %v1487, 2147483648
  %v1534 = vxor.u32 %v1492, 2147483648
  %v1535 = vxor.u32 %v1497, 2147483648
  %v1536 = vxor.u32 %v1502, 2147483648
  %v1537 = vxor.u32 %v1507, 2147483648
  %v1538 = vxor.u32 %v1512, 2147483648
  %v1539 = vxor.u32 %v1517, 2147483648
  %v1540 = vmul.f32 %v1530, 1.442695
  %v1541 = vpow.pop %v1540
  %v1542 = vmul.f32 %v1531, 1.442695
  %v1543 = vpow.pop %v1542
  %v1544 = vmul.f32 %v1532, 1.442695
  %v1545 = vpow.pop %v1544
  %v1546 = vmul.f32 %v1533, 1.442695
  %v1547 = vpow.pop %v1546
  %v1548 = vmul.f32 %v1534, 1.442695
  %v1549 = vpow.pop %v1548
  %v1550 = vmul.f32 %v1535, 1.442695
  %v1551 = vpow.pop %v1550
  %v1552 = vmul.f32 %v1536, 1.442695
  %v1553 = vpow.pop %v1552
  %v1554 = vmul.f32 %v1537, 1.442695
  %v1555 = vpow.pop %v1554
  %v1556 = vmul.f32 %v1538, 1.442695
  %v1557 = vpow.pop %v1556
  %v1558 = vmul.f32 %v1539, 1.442695
  %v1559 = vpow.pop %v1558
  %v1560 = vadd.f32 %v1541, 1.0
  %v1561 = vadd.f32 %v1543, 1.0
  %v1562 = vadd.f32 %v1545, 1.0
  %v1563 = vadd.f32 %v1547, 1.0
  %v1564 = vadd.f32 %v1549, 1.0
  %v1565 = vadd.f32 %v1551, 1.0
  %v1566 = vadd.f32 %v1553, 1.0
  %v1567 = vadd.f32 %v1555, 1.0
  %v1568 = vadd.f32 %v1557, 1.0
  %v1569 = vadd.f32 %v1559, 1.0
  %v1570 = vrcp.pop %v1560
  %v1571 = vmul.f32 1.0, %v1570
  %v1572 = vrcp.pop %v1561
  %v1573 = vmul.f32 1.0, %v1572
  %v1574 = vrcp.pop %v1562
  %v1575 = vmul.f32 1.0, %v1574
  %v1576 = vrcp.pop %v1563
  %v1577 = vmul.f32 1.0, %v1576
  %v1578 = vrcp.pop %v1564
  %v1579 = vmul.f32 1.0, %v1578
  %v1580 = vrcp.pop %v1565
  %v1581 = vmul.f32 1.0, %v1580
  %v1582 = vrcp.pop %v1566
  %v1583 = vmul.f32 1.0, %v1582
  %v1584 = vrcp.pop %v1567
  %v1585 = vmul.f32 1.0, %v1584
  %v1586 = vrcp.pop %v1568
  %v1587 = vmul.f32 1.0, %v1586
  %v1588 = vrcp.pop %v1569
  %v1589 = vmul.f32 1.0, %v1588
  %1600 = vrot.lane.b32.xlu0 %v1571, 96
  %v1601 = vpop.permute.xlu0 %1600
  %1602 = vrot.lane.b32.xlu0 %v1573, 96
  %v1603 = vpop.permute.xlu0 %1602
  %1604 = vrot.lane.b32.xlu0 %v1575, 96
  %v1605 = vpop.permute.xlu0 %1604
  %1606 = vrot.lane.b32.xlu0 %v1577, 96
  %v1607 = vpop.permute.xlu0 %1606
  %1608 = vrot.lane.b32.xlu0 %v1579, 96
  %v1609 = vpop.permute.xlu0 %1608
  %1610 = vrot.lane.b32.xlu0 %v1581, 96
  %v1611 = vpop.permute.xlu0 %1610
  %1612 = vrot.lane.b32.xlu0 %v1583, 96
  %v1613 = vpop.permute.xlu0 %1612
  %1614 = vrot.lane.b32.xlu0 %v1585, 96
  %v1615 = vpop.permute.xlu0 %1614
  %1616 = vrot.lane.b32.xlu0 %v1587, 96
  %v1617 = vpop.permute.xlu0 %1616
  %1618 = vrot.lane.b32.xlu0 %v1589, 96
  %v1619 = vpop.permute.xlu0 %1618
  %v1630 = vmul.f32 %v1520, %v1601
  %v1631 = vmul.f32 %v1521, %v1603
  %v1632 = vmul.f32 %v1522, %v1605
  %v1633 = vmul.f32 %v1523, %v1607
  %v1634 = vmul.f32 %v1524, %v1609
  %v1635 = vmul.f32 %v1525, %v1611
  %v1636 = vmul.f32 %v1526, %v1613
  %v1637 = vmul.f32 %v1527, %v1615
  %v1638 = vmul.f32 %v1528, %v1617
  %v1639 = vmul.f32 %v1529, %v1619
  %v1640 = vld [vmem:[%s1 + $0x180] sm:$0xff]
  %v1641 = vld [vmem:[%s1 + $0x188] sm:$0xff]
  %v1642 = vld [vmem:[%s1 + $0x190] sm:$0xff]
  %v1643 = vld [vmem:[%s1 + $0x198] sm:$0xff]
  %v1644 = vld [vmem:[%s1 + $0x207] sm:$0x1]
  %v1645 = vlaneseq
  %v1646 = vshrl.u32 %v1645, 7
  %v1647 = vsub.s32 0, %v1646
  %v1648 = vrot.slane %v1644, %v1647
  %v1650 = vsel %vm305, %v1630, 0
  %v1653 = vsel %vm305, %v1631, 0
  %v1656 = vsel %vm305, %v1632, 0
  %v1659 = vsel %vm305, %v1633, 0
  %v1662 = vsel %vm305, %v1634, 0
  %v1665 = vsel %vm305, %v1635, 0
  %v1668 = vsel %vm305, %v1636, 0
  %v1671 = vsel %vm305, %v1637, 0
  %v1674 = vsel %vm305, %v1638, 0
  %v1677 = vsel %vm305, %v1639, 0
  %1679 = vmatprep.subr.mxu0 0.0
  %1680 = vmatpush1.msra.mxu0 %v1640
  %1681 = vmatprep.subr.mxu0 0.0
  %1682 = vmatpush1.msra.mxu0 %v1641
  %1683 = vmatprep.subr.mxu0 0.0
  %1684 = vmatpush1.msra.mxu0 %v1642
  %1685 = vmatprep.subr.mxu0 0.0
  %1686 = vmatpush1.msra.mxu0 %v1643
  %1687 = vmatprep.subr.mxu0 0.0
  %1688 = vmatpush1.msra.mxu0 0.0
  %1689 = vmatprep.subr.mxu0 0.0
  %1690 = vmatpush1.msra.mxu0 0.0
  %1691 = vmatprep.subr.mxu0 0.0
  %1692 = vmatpush1.msra.mxu0 0.0
  %1693 = vmatprep.subr.mxu0 0.0
  %1694 = vmatpush1.msra.mxu0 0.0
  %1695 = vmatprep.subr.mxu0 0.0
  %1696 = vmatpush1.msra.mxu0 0.0
  %1697 = vmatprep.subr.mxu0 0.0
  %1698 = vmatpush1.msra.mxu0 0.0
  %1699 = vmatprep.subr.mxu0 0.0
  %1700 = vmatpush1.msra.mxu0 0.0
  %1701 = vmatprep.subr.mxu0 0.0
  %1702 = vmatpush1.msra.mxu0 0.0
  %1703 = vmatprep.subr.mxu0 0.0
  %1704 = vmatpush1.msra.mxu0 0.0
  %1705 = vmatprep.subr.mxu0 0.0
  %1706 = vmatpush1.msra.mxu0 0.0
  %1707 = vmatprep.subr.mxu0 0.0
  %1708 = vmatpush1.msra.mxu0 0.0
  %1709 = vmatprep.subr.mxu0 0.0
  %1710 = vmatpush1.msra.mxu0 0.0
  %1711 = vmatprep.subr.mxu0 0.0
  %1712 = vmatpush1.msra.mxu0 0.0
  %1713 = vmatprep.subr.mxu0 0.0
  %1714 = vmatpush1.msra.mxu0 0.0
  %1715 = vmatprep.subr.mxu0 0.0
  %1716 = vmatpush1.msra.mxu0 0.0
  %1717 = vmatprep.subr.mxu0 0.0
  %1718 = vmatpush1.msra.mxu0 0.0
  %1719 = vmatprep.subr.mxu0 0.0
  %1720 = vmatpush1.msra.mxu0 0.0
  %1721 = vmatprep.subr.mxu0 0.0
  %1722 = vmatpush1.msra.mxu0 0.0
  %1723 = vmatprep.subr.mxu0 0.0
  %1724 = vmatpush1.msra.mxu0 0.0
  %1725 = vmatprep.subr.mxu0 0.0
  %1726 = vmatpush1.msra.mxu0 0.0
  %1727 = vmatprep.subr.mxu0 0.0
  %1728 = vmatpush1.msra.mxu0 0.0
  %1729 = vmatprep.subr.mxu0 0.0
  %1730 = vmatpush1.msra.mxu0 0.0
  %1731 = vmatprep.subr.mxu0 0.0
  %1732 = vmatpush1.msra.mxu0 0.0
  %1733 = vmatprep.subr.mxu0 0.0
  %1734 = vmatpush1.msra.mxu0 0.0
  %1735 = vmatprep.subr.mxu0 0.0
  %1736 = vmatpush1.msra.mxu0 0.0
  %1737 = vmatprep.subr.mxu0 0.0
  %1738 = vmatpush1.msra.mxu0 0.0
  %1739 = vmatprep.subr.mxu0 0.0
  %1740 = vmatpush1.msra.mxu0 0.0
  %1741 = vmatprep.subr.mxu0 0.0
  %1742 = vmatpush1.msra.mxu0 0.0
  %1743 = vmatprep.mubr.f32.mxu0 0.0
  %1744 = vmatmul.mubr.f32.gmra.mrb[0].mxu0 %v1650
  %v1745 = vpop.f32.mrb[0].mxu0
  %v1746 = vadd.f32 %v1648, %v1745
  %v1747 = vpop.f32.mrb[0].mxu0
  %1748 = vmatprep.mubr.f32.mxu0 0.0
  %1749 = vmatmul.mubr.f32.gmra.mrb[0].mxu0 %v1653
  %v1750 = vpop.f32.mrb[0].mxu0
  %v1751 = vadd.f32 %v1648, %v1750
  %v1752 = vpop.f32.mrb[0].mxu0
  %1753 = vmatprep.mubr.f32.mxu0 0.0
  %1754 = vmatmul.mubr.f32.gmra.mrb[0].mxu0 %v1656
  %v1755 = vpop.f32.mrb[0].mxu0
  %v1756 = vadd.f32 %v1648, %v1755
  %v1757 = vpop.f32.mrb[0].mxu0
  %1758 = vmatprep.mubr.f32.mxu0 0.0
  %1759 = vmatmul.mubr.f32.gmra.mrb[0].mxu0 %v1659
  %v1760 = vpop.f32.mrb[0].mxu0
  %v1761 = vadd.f32 %v1648, %v1760
  %v1762 = vpop.f32.mrb[0].mxu0
  %1763 = vmatprep.mubr.f32.mxu0 0.0
  %1764 = vmatmul.mubr.f32.gmra.mrb[0].mxu0 %v1662
  %v1765 = vpop.f32.mrb[0].mxu0
  %v1766 = vadd.f32 %v1648, %v1765
  %v1767 = vpop.f32.mrb[0].mxu0
  %1768 = vmatprep.mubr.f32.mxu0 0.0
  %1769 = vmatmul.mubr.f32.gmra.mrb[0].mxu0 %v1665
  %v1770 = vpop.f32.mrb[0].mxu0
  %v1771 = vadd.f32 %v1648, %v1770
  %v1772 = vpop.f32.mrb[0].mxu0
  %1773 = vmatprep.mubr.f32.mxu0 0.0
  %1774 = vmatmul.mubr.f32.gmra.mrb[0].mxu0 %v1668
  %v1775 = vpop.f32.mrb[0].mxu0
  %v1776 = vadd.f32 %v1648, %v1775
  %v1777 = vpop.f32.mrb[0].mxu0
  %1778 = vmatprep.mubr.f32.mxu0 0.0
  %1779 = vmatmul.mubr.f32.gmra.mrb[0].mxu0 %v1671
  %v1780 = vpop.f32.mrb[0].mxu0
  %v1781 = vadd.f32 %v1648, %v1780
  %v1782 = vpop.f32.mrb[0].mxu0
  %1783 = vmatprep.mubr.f32.mxu0 0.0
  %1784 = vmatmul.mubr.f32.gmra.mrb[0].mxu0 %v1674
  %v1785 = vpop.f32.mrb[0].mxu0
  %v1786 = vadd.f32 %v1648, %v1785
  %v1787 = vpop.f32.mrb[0].mxu0
  %1788 = vmatprep.mubr.f32.mxu0 0.0
  %1789 = vmatmul.mubr.f32.gmra.mrb[0].mxu0 %v1677
  %v1790 = vpop.f32.mrb[0].mxu0
  %v1791 = vadd.f32 %v1648, %v1790
  %v1792 = vpop.f32.mrb[0].mxu0
  %1793 = vdwg.mxu0
  %v1794 = vadd.f32 %v1271, %v1746
  %v1795 = vadd.f32 %v1272, %v1751
  %v1796 = vadd.f32 %v1273, %v1756
  %v1797 = vadd.f32 %v1274, %v1761
  %v1798 = vadd.f32 %v1275, %v1766
  %v1799 = vadd.f32 %v1276, %v1771
  %v1800 = vadd.f32 %v1277, %v1776
  %v1801 = vadd.f32 %v1278, %v1781
  %v1802 = vadd.f32 %v1279, %v1786
  %v1803 = vadd.f32 %v1280, %v1791
  %v1804 = vadd.f32 %v1281, %v1746
  %v1805 = vadd.f32 %v1282, %v1751
  %v1806 = vadd.f32 %v1283, %v1756
  %v1807 = vadd.f32 %v1284, %v1761
  %v1808 = vadd.f32 %v1285, %v1766
  %v1809 = vadd.f32 %v1286, %v1771
  %v1810 = vadd.f32 %v1287, %v1776
  %v1811 = vadd.f32 %v1288, %v1781
  %v1812 = vadd.f32 %v1289, %v1786
  %v1813 = vadd.f32 %v1290, %v1791
  %1824 = vrot.lane.b32.xlu0 %v1794, 32
  %v1825 = vpop.permute.xlu0 %1824
  %1826 = vrot.lane.b32.xlu0 %v1795, 32
  %v1827 = vpop.permute.xlu0 %1826
  %1828 = vrot.lane.b32.xlu0 %v1796, 32
  %v1829 = vpop.permute.xlu0 %1828
  %1830 = vrot.lane.b32.xlu0 %v1797, 32
  %v1831 = vpop.permute.xlu0 %1830
  %1832 = vrot.lane.b32.xlu0 %v1798, 32
  %v1833 = vpop.permute.xlu0 %1832
  %1834 = vrot.lane.b32.xlu0 %v1799, 32
  %v1835 = vpop.permute.xlu0 %1834
  %1836 = vrot.lane.b32.xlu0 %v1800, 32
  %v1837 = vpop.permute.xlu0 %1836
  %1838 = vrot.lane.b32.xlu0 %v1801, 32
  %v1839 = vpop.permute.xlu0 %1838
  %1840 = vrot.lane.b32.xlu0 %v1802, 32
  %v1841 = vpop.permute.xlu0 %1840
  %1842 = vrot.lane.b32.xlu0 %v1803, 32
  %v1843 = vpop.permute.xlu0 %1842
  %v1854 = vsel %vm305, %v1803, %v1825
  %v1855 = vsel %vm305, %v1794, %v1827
  %v1856 = vsel %vm305, %v1795, %v1829
  %v1857 = vsel %vm305, %v1796, %v1831
  %v1858 = vsel %vm305, %v1797, %v1833
  %v1859 = vsel %vm305, %v1798, %v1835
  %v1860 = vsel %vm305, %v1799, %v1837
  %v1861 = vsel %vm305, %v1800, %v1839
  %v1862 = vsel %vm305, %v1801, %v1841
  %v1863 = vsel %vm305, %v1802, %v1843
  %v1864 = vld [vmem:[%s1 + $0x100] sm:$0xff]
  %v1865 = vld [vmem:[%s1 + $0x108] sm:$0xff]
  %v1866 = vld [vmem:[%s1 + $0x110] sm:$0xff]
  %v1867 = vld [vmem:[%s1 + $0x118] sm:$0xff]
  %v1868 = vld [vmem:[%s1 + $0x120] sm:$0xff]
  %v1869 = vld [vmem:[%s1 + $0x128] sm:$0xff]
  %v1870 = vld [vmem:[%s1 + $0x130] sm:$0xff]
  %v1871 = vld [vmem:[%s1 + $0x138] sm:$0xff]
  %v1872 = vld [vmem:[%s1 + $0x204] sm:$0x1]
  %v1873 = vlaneseq
  %v1874 = vshrl.u32 %v1873, 7
  %v1875 = vsub.s32 0, %v1874
  %v1876 = vrot.slane %v1872, %v1875
  %v1878 = vsel %vm96, %v1854, 0
  %v1881 = vsel %vm96, %v1855, 0
  %v1884 = vsel %vm96, %v1856, 0
  %v1887 = vsel %vm96, %v1857, 0
  %v1890 = vsel %vm96, %v1858, 0
  %v1893 = vsel %vm96, %v1859, 0
  %v1896 = vsel %vm96, %v1860, 0
  %v1899 = vsel %vm96, %v1861, 0
  %v1902 = vsel %vm96, %v1862, 0
  %v1905 = vsel %vm96, %v1863, 0
  %1907 = vmatprep.subr.mxu0 0.0
  %1908 = vmatpush1.msra.mxu0 %v1864
  %1909 = vmatprep.subr.mxu0 0.0
  %1910 = vmatpush1.msra.mxu0 %v1865
  %1911 = vmatprep.subr.mxu0 0.0
  %1912 = vmatpush1.msra.mxu0 %v1866
  %1913 = vmatprep.subr.mxu0 0.0
  %1914 = vmatpush1.msra.mxu0 %v1867
  %1915 = vmatprep.subr.mxu0 0.0
  %1916 = vmatpush1.msra.mxu0 %v1868
  %1917 = vmatprep.subr.mxu0 0.0
  %1918 = vmatpush1.msra.mxu0 %v1869
  %1919 = vmatprep.subr.mxu0 0.0
  %1920 = vmatpush1.msra.mxu0 %v1870
  %1921 = vmatprep.subr.mxu0 0.0
  %1922 = vmatpush1.msra.mxu0 %v1871
  %1923 = vmatprep.subr.mxu0 0.0
  %1924 = vmatpush1.msra.mxu0 0.0
  %1925 = vmatprep.subr.mxu0 0.0
  %1926 = vmatpush1.msra.mxu0 0.0
  %1927 = vmatprep.subr.mxu0 0.0
  %1928 = vmatpush1.msra.mxu0 0.0
  %1929 = vmatprep.subr.mxu0 0.0
  %1930 = vmatpush1.msra.mxu0 0.0
  %1931 = vmatprep.subr.mxu0 0.0
  %1932 = vmatpush1.msra.mxu0 0.0
  %1933 = vmatprep.subr.mxu0 0.0
  %1934 = vmatpush1.msra.mxu0 0.0
  %1935 = vmatprep.subr.mxu0 0.0
  %1936 = vmatpush1.msra.mxu0 0.0
  %1937 = vmatprep.subr.mxu0 0.0
  %1938 = vmatpush1.msra.mxu0 0.0
  %1939 = vmatprep.subr.mxu0 0.0
  %1940 = vmatpush1.msra.mxu0 0.0
  %1941 = vmatprep.subr.mxu0 0.0
  %1942 = vmatpush1.msra.mxu0 0.0
  %1943 = vmatprep.subr.mxu0 0.0
  %1944 = vmatpush1.msra.mxu0 0.0
  %1945 = vmatprep.subr.mxu0 0.0
  %1946 = vmatpush1.msra.mxu0 0.0
  %1947 = vmatprep.subr.mxu0 0.0
  %1948 = vmatpush1.msra.mxu0 0.0
  %1949 = vmatprep.subr.mxu0 0.0
  %1950 = vmatpush1.msra.mxu0 0.0
  %1951 = vmatprep.subr.mxu0 0.0
  %1952 = vmatpush1.msra.mxu0 0.0
  %1953 = vmatprep.subr.mxu0 0.0
  %1954 = vmatpush1.msra.mxu0 0.0
  %1955 = vmatprep.subr.mxu0 0.0
  %1956 = vmatpush1.msra.mxu0 0.0
  %1957 = vmatprep.subr.mxu0 0.0
  %1958 = vmatpush1.msra.mxu0 0.0
  %1959 = vmatprep.subr.mxu0 0.0
  %1960 = vmatpush1.msra.mxu0 0.0
  %1961 = vmatprep.subr.mxu0 0.0
  %1962 = vmatpush1.msra.mxu0 0.0
  %1963 = vmatprep.subr.mxu0 0.0
  %1964 = vmatpush1.msra.mxu0 0.0
  %1965 = vmatprep.subr.mxu0 0.0
  %1966 = vmatpush1.msra.mxu0 0.0
  %1967 = vmatprep.subr.mxu0 0.0
  %1968 = vmatpush1.msra.mxu0 0.0
  %1969 = vmatprep.subr.mxu0 0.0
  %1970 = vmatpush1.msra.mxu0 0.0
  %1971 = vmatprep.mubr.f32.mxu0 0.0
  %1972 = vmatmul.mubr.f32.gmra.mrb[0].mxu0 %v1878
  %v1973 = vpop.f32.mrb[0].mxu0
  %v1974 = vadd.f32 %v1876, %v1973
  %v1975 = vpop.f32.mrb[0].mxu0
  %1976 = vmatprep.mubr.f32.mxu0 0.0
  %1977 = vmatmul.mubr.f32.gmra.mrb[0].mxu0 %v1881
  %v1978 = vpop.f32.mrb[0].mxu0
  %v1979 = vadd.f32 %v1876, %v1978
  %v1980 = vpop.f32.mrb[0].mxu0
  %1981 = vmatprep.mubr.f32.mxu0 0.0
  %1982 = vmatmul.mubr.f32.gmra.mrb[0].mxu0 %v1884
  %v1983 = vpop.f32.mrb[0].mxu0
  %v1984 = vadd.f32 %v1876, %v1983
  %v1985 = vpop.f32.mrb[0].mxu0
  %1986 = vmatprep.mubr.f32.mxu0 0.0
  %1987 = vmatmul.mubr.f32.gmra.mrb[0].mxu0 %v1887
  %v1988 = vpop.f32.mrb[0].mxu0
  %v1989 = vadd.f32 %v1876, %v1988
  %v1990 = vpop.f32.mrb[0].mxu0
  %1991 = vmatprep.mubr.f32.mxu0 0.0
  %1992 = vmatmul.mubr.f32.gmra.mrb[0].mxu0 %v1890
  %v1993 = vpop.f32.mrb[0].mxu0
  %v1994 = vadd.f32 %v1876, %v1993
  %v1995 = vpop.f32.mrb[0].mxu0
  %1996 = vmatprep.mubr.f32.mxu0 0.0
  %1997 = vmatmul.mubr.f32.gmra.mrb[0].mxu0 %v1893
  %v1998 = vpop.f32.mrb[0].mxu0
  %v1999 = vadd.f32 %v1876, %v1998
  %v2000 = vpop.f32.mrb[0].mxu0
  %2001 = vmatprep.mubr.f32.mxu0 0.0
  %2002 = vmatmul.mubr.f32.gmra.mrb[0].mxu0 %v1896
  %v2003 = vpop.f32.mrb[0].mxu0
  %v2004 = vadd.f32 %v1876, %v2003
  %v2005 = vpop.f32.mrb[0].mxu0
  %2006 = vmatprep.mubr.f32.mxu0 0.0
  %2007 = vmatmul.mubr.f32.gmra.mrb[0].mxu0 %v1899
  %v2008 = vpop.f32.mrb[0].mxu0
  %v2009 = vadd.f32 %v1876, %v2008
  %v2010 = vpop.f32.mrb[0].mxu0
  %2011 = vmatprep.mubr.f32.mxu0 0.0
  %2012 = vmatmul.mubr.f32.gmra.mrb[0].mxu0 %v1902
  %v2013 = vpop.f32.mrb[0].mxu0
  %v2014 = vadd.f32 %v1876, %v2013
  %v2015 = vpop.f32.mrb[0].mxu0
  %2016 = vmatprep.mubr.f32.mxu0 0.0
  %2017 = vmatmul.mubr.f32.gmra.mrb[0].mxu0 %v1905
  %v2018 = vpop.f32.mrb[0].mxu0
  %v2019 = vadd.f32 %v1876, %v2018
  %v2020 = vpop.f32.mrb[0].mxu0
  %2021 = vdwg.mxu0
  %v2022 = vtanh.pop %v1974
  %v2023 = vtanh.pop %v1979
  %v2024 = vtanh.pop %v1984
  %v2025 = vtanh.pop %v1989
  %v2026 = vtanh.pop %v1994
  %v2027 = vtanh.pop %v1999
  %v2028 = vtanh.pop %v2004
  %v2029 = vtanh.pop %v2009
  %v2030 = vtanh.pop %v2014
  %v2031 = vtanh.pop %v2019
  %v2032 = vxor.u32 %v1974, 2147483648
  %v2033 = vxor.u32 %v1979, 2147483648
  %v2034 = vxor.u32 %v1984, 2147483648
  %v2035 = vxor.u32 %v1989, 2147483648
  %v2036 = vxor.u32 %v1994, 2147483648
  %v2037 = vxor.u32 %v1999, 2147483648
  %v2038 = vxor.u32 %v2004, 2147483648
  %v2039 = vxor.u32 %v2009, 2147483648
  %v2040 = vxor.u32 %v2014, 2147483648
  %v2041 = vxor.u32 %v2019, 2147483648
  %v2042 = vmul.f32 %v2032, 1.442695
  %v2043 = vpow.pop %v2042
  %v2044 = vmul.f32 %v2033, 1.442695
  %v2045 = vpow.pop %v2044
  %v2046 = vmul.f32 %v2034, 1.442695
  %v2047 = vpow.pop %v2046
  %v2048 = vmul.f32 %v2035, 1.442695
  %v2049 = vpow.pop %v2048
  %v2050 = vmul.f32 %v2036, 1.442695
  %v2051 = vpow.pop %v2050
  %v2052 = vmul.f32 %v2037, 1.442695
  %v2053 = vpow.pop %v2052
  %v2054 = vmul.f32 %v2038, 1.442695
  %v2055 = vpow.pop %v2054
  %v2056 = vmul.f32 %v2039, 1.442695
  %v2057 = vpow.pop %v2056
  %v2058 = vmul.f32 %v2040, 1.442695
  %v2059 = vpow.pop %v2058
  %v2060 = vmul.f32 %v2041, 1.442695
  %v2061 = vpow.pop %v2060
  %v2062 = vadd.f32 %v2043, 1.0
  %v2063 = vadd.f32 %v2045, 1.0
  %v2064 = vadd.f32 %v2047, 1.0
  %v2065 = vadd.f32 %v2049, 1.0
  %v2066 = vadd.f32 %v2051, 1.0
  %v2067 = vadd.f32 %v2053, 1.0
  %v2068 = vadd.f32 %v2055, 1.0
  %v2069 = vadd.f32 %v2057, 1.0
  %v2070 = vadd.f32 %v2059, 1.0
  %v2071 = vadd.f32 %v2061, 1.0
  %v2072 = vrcp.pop %v2062
  %v2073 = vmul.f32 1.0, %v2072
  %v2074 = vrcp.pop %v2063
  %v2075 = vmul.f32 1.0, %v2074
  %v2076 = vrcp.pop %v2064
  %v2077 = vmul.f32 1.0, %v2076
  %v2078 = vrcp.pop %v2065
  %v2079 = vmul.f32 1.0, %v2078
  %v2080 = vrcp.pop %v2066
  %v2081 = vmul.f32 1.0, %v2080
  %v2082 = vrcp.pop %v2067
  %v2083 = vmul.f32 1.0, %v2082
  %v2084 = vrcp.pop %v2068
  %v2085 = vmul.f32 1.0, %v2084
  %v2086 = vrcp.pop %v2069
  %v2087 = vmul.f32 1.0, %v2086
  %v2088 = vrcp.pop %v2070
  %v2089 = vmul.f32 1.0, %v2088
  %v2090 = vrcp.pop %v2071
  %v2091 = vmul.f32 1.0, %v2090
  %2102 = vrot.lane.b32.xlu0 %v2073, 96
  %v2103 = vpop.permute.xlu0 %2102
  %2104 = vrot.lane.b32.xlu0 %v2075, 96
  %v2105 = vpop.permute.xlu0 %2104
  %2106 = vrot.lane.b32.xlu0 %v2077, 96
  %v2107 = vpop.permute.xlu0 %2106
  %2108 = vrot.lane.b32.xlu0 %v2079, 96
  %v2109 = vpop.permute.xlu0 %2108
  %2110 = vrot.lane.b32.xlu0 %v2081, 96
  %v2111 = vpop.permute.xlu0 %2110
  %2112 = vrot.lane.b32.xlu0 %v2083, 96
  %v2113 = vpop.permute.xlu0 %2112
  %2114 = vrot.lane.b32.xlu0 %v2085, 96
  %v2115 = vpop.permute.xlu0 %2114
  %2116 = vrot.lane.b32.xlu0 %v2087, 96
  %v2117 = vpop.permute.xlu0 %2116
  %2118 = vrot.lane.b32.xlu0 %v2089, 96
  %v2119 = vpop.permute.xlu0 %2118
  %2120 = vrot.lane.b32.xlu0 %v2091, 96
  %v2121 = vpop.permute.xlu0 %2120
  %v2132 = vmul.f32 %v2022, %v2103
  %v2133 = vmul.f32 %v2023, %v2105
  %v2134 = vmul.f32 %v2024, %v2107
  %v2135 = vmul.f32 %v2025, %v2109
  %v2136 = vmul.f32 %v2026, %v2111
  %v2137 = vmul.f32 %v2027, %v2113
  %v2138 = vmul.f32 %v2028, %v2115
  %v2139 = vmul.f32 %v2029, %v2117
  %v2140 = vmul.f32 %v2030, %v2119
  %v2141 = vmul.f32 %v2031, %v2121
  %v2142 = vld [vmem:[%s1 + $0x1a0] sm:$0xff]
  %v2143 = vld [vmem:[%s1 + $0x1a8] sm:$0xff]
  %v2144 = vld [vmem:[%s1 + $0x1b0] sm:$0xff]
  %v2145 = vld [vmem:[%s1 + $0x1b8] sm:$0xff]
  %v2146 = vld [vmem:[%s1 + $0x208] sm:$0x1]
  %v2147 = vlaneseq
  %v2148 = vshrl.u32 %v2147, 7
  %v2149 = vsub.s32 0, %v2148
  %v2150 = vrot.slane %v2146, %v2149
  %v2152 = vsel %vm305, %v2132, 0
  %v2155 = vsel %vm305, %v2133, 0
  %v2158 = vsel %vm305, %v2134, 0
  %v2161 = vsel %vm305, %v2135, 0
  %v2164 = vsel %vm305, %v2136, 0
  %v2167 = vsel %vm305, %v2137, 0
  %v2170 = vsel %vm305, %v2138, 0
  %v2173 = vsel %vm305, %v2139, 0
  %v2176 = vsel %vm305, %v2140, 0
  %v2179 = vsel %vm305, %v2141, 0
  %2181 = vmatprep.subr.mxu0 0.0
  %2182 = vmatpush1.msra.mxu0 %v2142
  %2183 = vmatprep.subr.mxu0 0.0
  %2184 = vmatpush1.msra.mxu0 %v2143
  %2185 = vmatprep.subr.mxu0 0.0
  %2186 = vmatpush1.msra.mxu0 %v2144
  %2187 = vmatprep.subr.mxu0 0.0
  %2188 = vmatpush1.msra.mxu0 %v2145
  %2189 = vmatprep.subr.mxu0 0.0
  %2190 = vmatpush1.msra.mxu0 0.0
  %2191 = vmatprep.subr.mxu0 0.0
  %2192 = vmatpush1.msra.mxu0 0.0
  %2193 = vmatprep.subr.mxu0 0.0
  %2194 = vmatpush1.msra.mxu0 0.0
  %2195 = vmatprep.subr.mxu0 0.0
  %2196 = vmatpush1.msra.mxu0 0.0
  %2197 = vmatprep.subr.mxu0 0.0
  %2198 = vmatpush1.msra.mxu0 0.0
  %2199 = vmatprep.subr.mxu0 0.0
  %2200 = vmatpush1.msra.mxu0 0.0
  %2201 = vmatprep.subr.mxu0 0.0
  %2202 = vmatpush1.msra.mxu0 0.0
  %2203 = vmatprep.subr.mxu0 0.0
  %2204 = vmatpush1.msra.mxu0 0.0
  %2205 = vmatprep.subr.mxu0 0.0
  %2206 = vmatpush1.msra.mxu0 0.0
  %2207 = vmatprep.subr.mxu0 0.0
  %2208 = vmatpush1.msra.mxu0 0.0
  %2209 = vmatprep.subr.mxu0 0.0
  %2210 = vmatpush1.msra.mxu0 0.0
  %2211 = vmatprep.subr.mxu0 0.0
  %2212 = vmatpush1.msra.mxu0 0.0
  %2213 = vmatprep.subr.mxu0 0.0
  %2214 = vmatpush1.msra.mxu0 0.0
  %2215 = vmatprep.subr.mxu0 0.0
  %2216 = vmatpush1.msra.mxu0 0.0
  %2217 = vmatprep.subr.mxu0 0.0
  %2218 = vmatpush1.msra.mxu0 0.0
  %2219 = vmatprep.subr.mxu0 0.0
  %2220 = vmatpush1.msra.mxu0 0.0
  %2221 = vmatprep.subr.mxu0 0.0
  %2222 = vmatpush1.msra.mxu0 0.0
  %2223 = vmatprep.subr.mxu0 0.0
  %2224 = vmatpush1.msra.mxu0 0.0
  %2225 = vmatprep.subr.mxu0 0.0
  %2226 = vmatpush1.msra.mxu0 0.0
  %2227 = vmatprep.subr.mxu0 0.0
  %2228 = vmatpush1.msra.mxu0 0.0
  %2229 = vmatprep.subr.mxu0 0.0
  %2230 = vmatpush1.msra.mxu0 0.0
  %2231 = vmatprep.subr.mxu0 0.0
  %2232 = vmatpush1.msra.mxu0 0.0
  %2233 = vmatprep.subr.mxu0 0.0
  %2234 = vmatpush1.msra.mxu0 0.0
  %2235 = vmatprep.subr.mxu0 0.0
  %2236 = vmatpush1.msra.mxu0 0.0
  %2237 = vmatprep.subr.mxu0 0.0
  %2238 = vmatpush1.msra.mxu0 0.0
  %2239 = vmatprep.subr.mxu0 0.0
  %2240 = vmatpush1.msra.mxu0 0.0
  %2241 = vmatprep.subr.mxu0 0.0
  %2242 = vmatpush1.msra.mxu0 0.0
  %2243 = vmatprep.subr.mxu0 0.0
  %2244 = vmatpush1.msra.mxu0 0.0
  %2245 = vmatprep.mubr.f32.mxu0 0.0
  %2246 = vmatmul.mubr.f32.gmra.mrb[0].mxu0 %v2152
  %v2247 = vpop.f32.mrb[0].mxu0
  %v2248 = vadd.f32 %v2150, %v2247
  %v2249 = vpop.f32.mrb[0].mxu0
  %2250 = vmatprep.mubr.f32.mxu0 0.0
  %2251 = vmatmul.mubr.f32.gmra.mrb[0].mxu0 %v2155
  %v2252 = vpop.f32.mrb[0].mxu0
  %v2253 = vadd.f32 %v2150, %v2252
  %v2254 = vpop.f32.mrb[0].mxu0
  %2255 = vmatprep.mubr.f32.mxu0 0.0
  %2256 = vmatmul.mubr.f32.gmra.mrb[0].mxu0 %v2158
  %v2257 = vpop.f32.mrb[0].mxu0
  %v2258 = vadd.f32 %v2150, %v2257
  %v2259 = vpop.f32.mrb[0].mxu0
  %2260 = vmatprep.mubr.f32.mxu0 0.0
  %2261 = vmatmul.mubr.f32.gmra.mrb[0].mxu0 %v2161
  %v2262 = vpop.f32.mrb[0].mxu0
  %v2263 = vadd.f32 %v2150, %v2262
  %v2264 = vpop.f32.mrb[0].mxu0
  %2265 = vmatprep.mubr.f32.mxu0 0.0
  %2266 = vmatmul.mubr.f32.gmra.mrb[0].mxu0 %v2164
  %v2267 = vpop.f32.mrb[0].mxu0
  %v2268 = vadd.f32 %v2150, %v2267
  %v2269 = vpop.f32.mrb[0].mxu0
  %2270 = vmatprep.mubr.f32.mxu0 0.0
  %2271 = vmatmul.mubr.f32.gmra.mrb[0].mxu0 %v2167
  %v2272 = vpop.f32.mrb[0].mxu0
  %v2273 = vadd.f32 %v2150, %v2272
  %v2274 = vpop.f32.mrb[0].mxu0
  %2275 = vmatprep.mubr.f32.mxu0 0.0
  %2276 = vmatmul.mubr.f32.gmra.mrb[0].mxu0 %v2170
  %v2277 = vpop.f32.mrb[0].mxu0
  %v2278 = vadd.f32 %v2150, %v2277
  %v2279 = vpop.f32.mrb[0].mxu0
  %2280 = vmatprep.mubr.f32.mxu0 0.0
  %2281 = vmatmul.mubr.f32.gmra.mrb[0].mxu0 %v2173
  %v2282 = vpop.f32.mrb[0].mxu0
  %v2283 = vadd.f32 %v2150, %v2282
  %v2284 = vpop.f32.mrb[0].mxu0
  %2285 = vmatprep.mubr.f32.mxu0 0.0
  %2286 = vmatmul.mubr.f32.gmra.mrb[0].mxu0 %v2176
  %v2287 = vpop.f32.mrb[0].mxu0
  %v2288 = vadd.f32 %v2150, %v2287
  %v2289 = vpop.f32.mrb[0].mxu0
  %2290 = vmatprep.mubr.f32.mxu0 0.0
  %2291 = vmatmul.mubr.f32.gmra.mrb[0].mxu0 %v2179
  %v2292 = vpop.f32.mrb[0].mxu0
  %v2293 = vadd.f32 %v2150, %v2292
  %v2294 = vpop.f32.mrb[0].mxu0
  %2295 = vdwg.mxu0
  %v2296 = vadd.f32 %v1804, %v2248
  %v2297 = vadd.f32 %v1805, %v2253
  %v2298 = vadd.f32 %v1806, %v2258
  %v2299 = vadd.f32 %v1807, %v2263
  %v2300 = vadd.f32 %v1808, %v2268
  %v2301 = vadd.f32 %v1809, %v2273
  %v2302 = vadd.f32 %v1810, %v2278
  %v2303 = vadd.f32 %v1811, %v2283
  %v2304 = vadd.f32 %v1812, %v2288
  %v2305 = vadd.f32 %v1813, %v2293
  %v2306 = vmax.f32 %v2296, 0.0
  %v2307 = vmax.f32 %v2297, 0.0
  %v2308 = vmax.f32 %v2298, 0.0
  %v2309 = vmax.f32 %v2299, 0.0
  %v2310 = vmax.f32 %v2300, 0.0
  %v2311 = vmax.f32 %v2301, 0.0
  %v2312 = vmax.f32 %v2302, 0.0
  %v2313 = vmax.f32 %v2303, 0.0
  %v2314 = vmax.f32 %v2304, 0.0
  %v2315 = vmax.f32 %v2305, 0.0
  %v2316 = vld [vmem:[%s1 + $0x1c0] sm:$0xff]
  %v2317 = vld [vmem:[%s1 + $0x1c8] sm:$0xff]
  %v2318 = vld [vmem:[%s1 + $0x1d0] sm:$0xff]
  %v2319 = vld [vmem:[%s1 + $0x1d8] sm:$0xff]
  %v2320 = vld [vmem:[%s1 + $0x209] sm:$0x1]
  %v2321 = vlaneseq
  %v2322 = vshrl.u32 %v2321, 7
  %v2323 = vsub.s32 0, %v2322
  %v2324 = vrot.slane %v2320, %v2323
  %v2326 = vsel %vm305, %v2306, 0
  %v2329 = vsel %vm305, %v2307, 0
  %v2332 = vsel %vm305, %v2308, 0
  %v2335 = vsel %vm305, %v2309, 0
  %v2338 = vsel %vm305, %v2310, 0
  %v2341 = vsel %vm305, %v2311, 0
  %v2344 = vsel %vm305, %v2312, 0
  %v2347 = vsel %vm305, %v2313, 0
  %v2350 = vsel %vm305, %v2314, 0
  %v2353 = vsel %vm305, %v2315, 0
  %2355 = vmatprep.subr.mxu0 0.0
  %2356 = vmatpush1.msra.mxu0 %v2316
  %2357 = vmatprep.subr.mxu0 0.0
  %2358 = vmatpush1.msra.mxu0 %v2317
  %2359 = vmatprep.subr.mxu0 0.0
  %2360 = vmatpush1.msra.mxu0 %v2318
  %2361 = vmatprep.subr.mxu0 0.0
  %2362 = vmatpush1.msra.mxu0 %v2319
  %2363 = vmatprep.subr.mxu0 0.0
  %2364 = vmatpush1.msra.mxu0 0.0
  %2365 = vmatprep.subr.mxu0 0.0
  %2366 = vmatpush1.msra.mxu0 0.0
  %2367 = vmatprep.subr.mxu0 0.0
  %2368 = vmatpush1.msra.mxu0 0.0
  %2369 = vmatprep.subr.mxu0 0.0
  %2370 = vmatpush1.msra.mxu0 0.0
  %2371 = vmatprep.subr.mxu0 0.0
  %2372 = vmatpush1.msra.mxu0 0.0
  %2373 = vmatprep.subr.mxu0 0.0
  %2374 = vmatpush1.msra.mxu0 0.0
  %2375 = vmatprep.subr.mxu0 0.0
  %2376 = vmatpush1.msra.mxu0 0.0
  %2377 = vmatprep.subr.mxu0 0.0
  %2378 = vmatpush1.msra.mxu0 0.0
  %2379 = vmatprep.subr.mxu0 0.0
  %2380 = vmatpush1.msra.mxu0 0.0
  %2381 = vmatprep.subr.mxu0 0.0
  %2382 = vmatpush1.msra.mxu0 0.0
  %2383 = vmatprep.subr.mxu0 0.0
  %2384 = vmatpush1.msra.mxu0 0.0
  %2385 = vmatprep.subr.mxu0 0.0
  %2386 = vmatpush1.msra.mxu0 0.0
  %2387 = vmatprep.subr.mxu0 0.0
  %2388 = vmatpush1.msra.mxu0 0.0
  %2389 = vmatprep.subr.mxu0 0.0
  %2390 = vmatpush1.msra.mxu0 0.0
  %2391 = vmatprep.subr.mxu0 0.0
  %2392 = vmatpush1.msra.mxu0 0.0
  %2393 = vmatprep.subr.mxu0 0.0
  %2394 = vmatpush1.msra.mxu0 0.0
  %2395 = vmatprep.subr.mxu0 0.0
  %2396 = vmatpush1.msra.mxu0 0.0
  %2397 = vmatprep.subr.mxu0 0.0
  %2398 = vmatpush1.msra.mxu0 0.0
  %2399 = vmatprep.subr.mxu0 0.0
  %2400 = vmatpush1.msra.mxu0 0.0
  %2401 = vmatprep.subr.mxu0 0.0
  %2402 = vmatpush1.msra.mxu0 0.0
  %2403 = vmatprep.subr.mxu0 0.0
  %2404 = vmatpush1.msra.mxu0 0.0
  %2405 = vmatprep.subr.mxu0 0.0
  %2406 = vmatpush1.msra.mxu0 0.0
  %2407 = vmatprep.subr.mxu0 0.0
  %2408 = vmatpush1.msra.mxu0 0.0
  %2409 = vmatprep.subr.mxu0 0.0
  %2410 = vmatpush1.msra.mxu0 0.0
  %2411 = vmatprep.subr.mxu0 0.0
  %2412 = vmatpush1.msra.mxu0 0.0
  %2413 = vmatprep.subr.mxu0 0.0
  %2414 = vmatpush1.msra.mxu0 0.0
  %2415 = vmatprep.subr.mxu0 0.0
  %2416 = vmatpush1.msra.mxu0 0.0
  %2417 = vmatprep.subr.mxu0 0.0
  %2418 = vmatpush1.msra.mxu0 0.0
  %2419 = vmatprep.mubr.f32.mxu0 0.0
  %2420 = vmatmul.mubr.f32.gmra.mrb[0].mxu0 %v2326
  %v2421 = vpop.f32.mrb[0].mxu0
  %v2422 = vadd.f32 %v2324, %v2421
  %v2423 = vpop.f32.mrb[0].mxu0
  %2424 = vmatprep.mubr.f32.mxu0 0.0
  %2425 = vmatmul.mubr.f32.gmra.mrb[0].mxu0 %v2329
  %v2426 = vpop.f32.mrb[0].mxu0
  %v2427 = vadd.f32 %v2324, %v2426
  %v2428 = vpop.f32.mrb[0].mxu0
  %2429 = vmatprep.mubr.f32.mxu0 0.0
  %2430 = vmatmul.mubr.f32.gmra.mrb[0].mxu0 %v2332
  %v2431 = vpop.f32.mrb[0].mxu0
  %v2432 = vadd.f32 %v2324, %v2431
  %v2433 = vpop.f32.mrb[0].mxu0
  %2434 = vmatprep.mubr.f32.mxu0 0.0
  %2435 = vmatmul.mubr.f32.gmra.mrb[0].mxu0 %v2335
  %v2436 = vpop.f32.mrb[0].mxu0
  %v2437 = vadd.f32 %v2324, %v2436
  %v2438 = vpop.f32.mrb[0].mxu0
  %2439 = vmatprep.mubr.f32.mxu0 0.0
  %2440 = vmatmul.mubr.f32.gmra.mrb[0].mxu0 %v2338
  %v2441 = vpop.f32.mrb[0].mxu0
  %v2442 = vadd.f32 %v2324, %v2441
  %v2443 = vpop.f32.mrb[0].mxu0
  %2444 = vmatprep.mubr.f32.mxu0 0.0
  %2445 = vmatmul.mubr.f32.gmra.mrb[0].mxu0 %v2341
  %v2446 = vpop.f32.mrb[0].mxu0
  %v2447 = vadd.f32 %v2324, %v2446
  %v2448 = vpop.f32.mrb[0].mxu0
  %2449 = vmatprep.mubr.f32.mxu0 0.0
  %2450 = vmatmul.mubr.f32.gmra.mrb[0].mxu0 %v2344
  %v2451 = vpop.f32.mrb[0].mxu0
  %v2452 = vadd.f32 %v2324, %v2451
  %v2453 = vpop.f32.mrb[0].mxu0
  %2454 = vmatprep.mubr.f32.mxu0 0.0
  %2455 = vmatmul.mubr.f32.gmra.mrb[0].mxu0 %v2347
  %v2456 = vpop.f32.mrb[0].mxu0
  %v2457 = vadd.f32 %v2324, %v2456
  %v2458 = vpop.f32.mrb[0].mxu0
  %2459 = vmatprep.mubr.f32.mxu0 0.0
  %2460 = vmatmul.mubr.f32.gmra.mrb[0].mxu0 %v2350
  %v2461 = vpop.f32.mrb[0].mxu0
  %v2462 = vadd.f32 %v2324, %v2461
  %v2463 = vpop.f32.mrb[0].mxu0
  %2464 = vmatprep.mubr.f32.mxu0 0.0
  %2465 = vmatmul.mubr.f32.gmra.mrb[0].mxu0 %v2353
  %v2466 = vpop.f32.mrb[0].mxu0
  %v2467 = vadd.f32 %v2324, %v2466
  %v2468 = vpop.f32.mrb[0].mxu0
  %2469 = vdwg.mxu0
  %v2470 = vmax.f32 %v2422, 0.0
  %v2471 = vmax.f32 %v2427, 0.0
  %v2472 = vmax.f32 %v2432, 0.0
  %v2473 = vmax.f32 %v2437, 0.0
  %v2474 = vmax.f32 %v2442, 0.0
  %v2475 = vmax.f32 %v2447, 0.0
  %v2476 = vmax.f32 %v2452, 0.0
  %v2477 = vmax.f32 %v2457, 0.0
  %v2478 = vmax.f32 %v2462, 0.0
  %v2479 = vmax.f32 %v2467, 0.0
  %v2480 = vld [vmem:[%s1 + $0x1e0] sm:$0xff]
  %v2481 = vld [vmem:[%s1 + $0x1e8] sm:$0xff]
  %v2482 = vld [vmem:[%s1 + $0x1f0] sm:$0xff]
  %v2483 = vld [vmem:[%s1 + $0x1f8] sm:$0xff]
  %v2484 = vld [vmem:[%s1 + $0x20a] sm:$0x1]
  %v2485 = vlaneseq
  %v2486 = vshrl.u32 %v2485, 7
  %v2487 = vsub.s32 0, %v2486
  %v2488 = vrot.slane %v2484, %v2487
  %v2490 = vsel %vm305, %v2470, 0
  %v2493 = vsel %vm305, %v2471, 0
  %v2496 = vsel %vm305, %v2472, 0
  %v2499 = vsel %vm305, %v2473, 0
  %v2502 = vsel %vm305, %v2474, 0
  %v2505 = vsel %vm305, %v2475, 0
  %v2508 = vsel %vm305, %v2476, 0
  %v2511 = vsel %vm305, %v2477, 0
  %v2514 = vsel %vm305, %v2478, 0
  %v2517 = vsel %vm305, %v2479, 0
  %2519 = vmatprep.subr.mxu0 0.0
  %2520 = vmatpush1.msra.mxu0 %v2480
  %2521 = vmatprep.subr.mxu0 0.0
  %2522 = vmatpush1.msra.mxu0 %v2481
  %2523 = vmatprep.subr.mxu0 0.0
  %2524 = vmatpush1.msra.mxu0 %v2482
  %2525 = vmatprep.subr.mxu0 0.0
  %2526 = vmatpush1.msra.mxu0 %v2483
  %2527 = vmatprep.subr.mxu0 0.0
  %2528 = vmatpush1.msra.mxu0 0.0
  %2529 = vmatprep.subr.mxu0 0.0
  %2530 = vmatpush1.msra.mxu0 0.0
  %2531 = vmatprep.subr.mxu0 0.0
  %2532 = vmatpush1.msra.mxu0 0.0
  %2533 = vmatprep.subr.mxu0 0.0
  %2534 = vmatpush1.msra.mxu0 0.0
  %2535 = vmatprep.subr.mxu0 0.0
  %2536 = vmatpush1.msra.mxu0 0.0
  %2537 = vmatprep.subr.mxu0 0.0
  %2538 = vmatpush1.msra.mxu0 0.0
  %2539 = vmatprep.subr.mxu0 0.0
  %2540 = vmatpush1.msra.mxu0 0.0
  %2541 = vmatprep.subr.mxu0 0.0
  %2542 = vmatpush1.msra.mxu0 0.0
  %2543 = vmatprep.subr.mxu0 0.0
  %2544 = vmatpush1.msra.mxu0 0.0
  %2545 = vmatprep.subr.mxu0 0.0
  %2546 = vmatpush1.msra.mxu0 0.0
  %2547 = vmatprep.subr.mxu0 0.0
  %2548 = vmatpush1.msra.mxu0 0.0
  %2549 = vmatprep.subr.mxu0 0.0
  %2550 = vmatpush1.msra.mxu0 0.0
  %2551 = vmatprep.subr.mxu0 0.0
  %2552 = vmatpush1.msra.mxu0 0.0
  %2553 = vmatprep.subr.mxu0 0.0
  %2554 = vmatpush1.msra.mxu0 0.0
  %2555 = vmatprep.subr.mxu0 0.0
  %2556 = vmatpush1.msra.mxu0 0.0
  %2557 = vmatprep.subr.mxu0 0.0
  %2558 = vmatpush1.msra.mxu0 0.0
  %2559 = vmatprep.subr.mxu0 0.0
  %2560 = vmatpush1.msra.mxu0 0.0
  %2561 = vmatprep.subr.mxu0 0.0
  %2562 = vmatpush1.msra.mxu0 0.0
  %2563 = vmatprep.subr.mxu0 0.0
  %2564 = vmatpush1.msra.mxu0 0.0
  %2565 = vmatprep.subr.mxu0 0.0
  %2566 = vmatpush1.msra.mxu0 0.0
  %2567 = vmatprep.subr.mxu0 0.0
  %2568 = vmatpush1.msra.mxu0 0.0
  %2569 = vmatprep.subr.mxu0 0.0
  %2570 = vmatpush1.msra.mxu0 0.0
  %2571 = vmatprep.subr.mxu0 0.0
  %2572 = vmatpush1.msra.mxu0 0.0
  %2573 = vmatprep.subr.mxu0 0.0
  %2574 = vmatpush1.msra.mxu0 0.0
  %2575 = vmatprep.subr.mxu0 0.0
  %2576 = vmatpush1.msra.mxu0 0.0
  %2577 = vmatprep.subr.mxu0 0.0
  %2578 = vmatpush1.msra.mxu0 0.0
  %2579 = vmatprep.subr.mxu0 0.0
  %2580 = vmatpush1.msra.mxu0 0.0
  %2581 = vmatprep.subr.mxu0 0.0
  %2582 = vmatpush1.msra.mxu0 0.0
  %2583 = vmatprep.mubr.f32.mxu0 0.0
  %2584 = vmatmul.mubr.f32.gmra.mrb[0].mxu0 %v2490
  %v2585 = vpop.f32.mrb[0].mxu0
  %v2586 = vadd.f32 %v2488, %v2585
  %v2587 = vpop.f32.mrb[0].mxu0
  %2588 = vmatprep.mubr.f32.mxu0 0.0
  %2589 = vmatmul.mubr.f32.gmra.mrb[0].mxu0 %v2493
  %v2590 = vpop.f32.mrb[0].mxu0
  %v2591 = vadd.f32 %v2488, %v2590
  %v2592 = vpop.f32.mrb[0].mxu0
  %2593 = vmatprep.mubr.f32.mxu0 0.0
  %2594 = vmatmul.mubr.f32.gmra.mrb[0].mxu0 %v2496
  %v2595 = vpop.f32.mrb[0].mxu0
  %v2596 = vadd.f32 %v2488, %v2595
  %v2597 = vpop.f32.mrb[0].mxu0
  %2598 = vmatprep.mubr.f32.mxu0 0.0
  %2599 = vmatmul.mubr.f32.gmra.mrb[0].mxu0 %v2499
  %v2600 = vpop.f32.mrb[0].mxu0
  %v2601 = vadd.f32 %v2488, %v2600
  %v2602 = vpop.f32.mrb[0].mxu0
  %2603 = vmatprep.mubr.f32.mxu0 0.0
  %2604 = vmatmul.mubr.f32.gmra.mrb[0].mxu0 %v2502
  %v2605 = vpop.f32.mrb[0].mxu0
  %v2606 = vadd.f32 %v2488, %v2605
  %v2607 = vpop.f32.mrb[0].mxu0
  %2608 = vmatprep.mubr.f32.mxu0 0.0
  %2609 = vmatmul.mubr.f32.gmra.mrb[0].mxu0 %v2505
  %v2610 = vpop.f32.mrb[0].mxu0
  %v2611 = vadd.f32 %v2488, %v2610
  %v2612 = vpop.f32.mrb[0].mxu0
  %2613 = vmatprep.mubr.f32.mxu0 0.0
  %2614 = vmatmul.mubr.f32.gmra.mrb[0].mxu0 %v2508
  %v2615 = vpop.f32.mrb[0].mxu0
  %v2616 = vadd.f32 %v2488, %v2615
  %v2617 = vpop.f32.mrb[0].mxu0
  %2618 = vmatprep.mubr.f32.mxu0 0.0
  %2619 = vmatmul.mubr.f32.gmra.mrb[0].mxu0 %v2511
  %v2620 = vpop.f32.mrb[0].mxu0
  %v2621 = vadd.f32 %v2488, %v2620
  %v2622 = vpop.f32.mrb[0].mxu0
  %2623 = vmatprep.mubr.f32.mxu0 0.0
  %2624 = vmatmul.mubr.f32.gmra.mrb[0].mxu0 %v2514
  %v2625 = vpop.f32.mrb[0].mxu0
  %v2626 = vadd.f32 %v2488, %v2625
  %v2627 = vpop.f32.mrb[0].mxu0
  %2628 = vmatprep.mubr.f32.mxu0 0.0
  %2629 = vmatmul.mubr.f32.gmra.mrb[0].mxu0 %v2517
  %v2630 = vpop.f32.mrb[0].mxu0
  %v2631 = vadd.f32 %v2488, %v2630
  %v2632 = vpop.f32.mrb[0].mxu0
  %2633 = vdwg.mxu0
  %2634 = vst [vmem:[%s2] sm:$0xff] %v2586
  %2635 = vst [vmem:[%s2 + $0x8] sm:$0xff] %v2591
  %2636 = vst [vmem:[%s2 + $0x10] sm:$0xff] %v2596
  %2637 = vst [vmem:[%s2 + $0x18] sm:$0xff] %v2601
  %2638 = vst [vmem:[%s2 + $0x20] sm:$0xff] %v2606
  %2639 = vst [vmem:[%s2 + $0x28] sm:$0xff] %v2611
  %2640 = vst [vmem:[%s2 + $0x30] sm:$0xff] %v2616
  %2641 = vst [vmem:[%s2 + $0x38] sm:$0xff] %v2621
  %2642 = vst [vmem:[%s2 + $0x40] sm:$0xff] %v2626
  %2643 = vst [vmem:[%s2 + $0x48] sm:$0xff] %v2631
  // Predicated region
  $region10: #{wavenet_forward.1} parent=0 // pred_check
    _
  $region11: #{wavenet_forward.1} parent=0 // pred_check_branch
    %2645 = sbr.rel (0) target = $region13
  $region12: #{wavenet_forward.1} parent=0 // pred_region
    _
  $region13: #{wavenet_forward.1} parent=0 // pred_fallthru
    _
  // Predicated region
  $region14: #{wavenet_forward.1} parent=0 // pred_check
    _
  $region15: #{wavenet_forward.1} parent=0 // pred_check_branch
    %2647 = sbr.rel (0) target = $region17
  $region16: #{wavenet_forward.1} parent=0 // pred_region
    _
  $region17: #{wavenet_forward.1} parent=0 // pred_fallthru
    _

</llo_original>
